<compile_context>
chip_gen: v7x
topology: tpu7x:2x2x1
jax: 0.10.0
libtpu: 0.0.40
codegen_flags: <defaults>
</compile_context>

<pallas_src>
import functools

import jax
import jax.numpy as jnp
from jax.experimental import pallas as pl
from jax.experimental.pallas import tpu as pltpu


# ------------------------------- Pallas kernel --------------------------------

def _gin2l_kernel(a_ref, x_ref, p_ref, w_in_ref, w_stk_ref, w_out_ref, b_ref,
                  o_ref):
    f32 = jnp.float32
    cdt = a_ref.dtype                    # bf16 compute dtype for MXU inputs
    h_dim = w_in_ref.shape[1]            # 32 (static)

    a = a_ref[...]                       # (N, N)  A + (1+eps) I, reused twice

    # packed biases: rows 0..4 hold the (1,32) biases, row 5 holds lin2 bias
    biases = b_ref[...]                  # (8, 128) f32
    b11 = biases[0:1, :h_dim]
    b12 = biases[1:2, :h_dim]
    b21 = biases[2:3, :h_dim]
    b22 = biases[3:4, :h_dim]
    bl1 = biases[4:5, :h_dim]
    bl2 = biases[5:6, :]                 # (1, 128)

    # packed 32x32 weights, stacked along the sublane axis
    w12 = w_stk_ref[0 * h_dim:1 * h_dim, :]
    w21 = w_stk_ref[1 * h_dim:2 * h_dim, :]
    w22 = w_stk_ref[2 * h_dim:3 * h_dim, :]
    wl1 = w_stk_ref[3 * h_dim:4 * h_dim, :]

    # ---- GINConv 1: nn( A_hat @ x ) ----
    agg = jnp.dot(a, x_ref[...], preferred_element_type=f32)              # [N, F_in]
    h = jnp.dot(agg.astype(cdt), w_in_ref[...], preferred_element_type=f32) + b11
    h = jnp.maximum(h, 0.0)
    h = jnp.dot(h.astype(cdt), w12, preferred_element_type=f32) + b12
    h = jnp.maximum(h, 0.0)                                               # [N, H]

    # ---- GINConv 2 ----
    agg = jnp.dot(a, h.astype(cdt), preferred_element_type=f32)
    h = jnp.dot(agg.astype(cdt), w21, preferred_element_type=f32) + b21
    h = jnp.maximum(h, 0.0)
    h = jnp.dot(h.astype(cdt), w22, preferred_element_type=f32) + b22
    h = jnp.maximum(h, 0.0)                                               # [N, H]

    # ---- GlobalMeanPool (as P @ H) + FFN head ----
    pooled = jnp.dot(p_ref[...], h.astype(cdt), preferred_element_type=f32)   # [G_pad, H]
    hid = jnp.dot(pooled.astype(cdt), wl1, preferred_element_type=f32) + bl1
    hid = jnp.maximum(hid, 0.0)
    # TODO(synk): nn.Dropout between the two FFN Linear layers is identity in eval mode.
    out = jnp.dot(hid.astype(cdt), w_out_ref[...], preferred_element_type=f32) + bl2
    o_ref[...] = out.astype(o_ref.dtype)                                  # [G_pad, 128]


# ----------------------- one-time parameter packing (host) ---------------------

def pack_params(params, c_pad=128):
    """Pack/cast all weights ONCE (outside the jitted per-forward path):
       - four 32x32 matrices stacked into one [4H, H] bf16 slab,
       - six biases packed into one [8, c_pad] f32 slab,
       - lin2 weight zero-padded to a lane-dense [H, c_pad] bf16 slab."""
    cdt = jnp.bfloat16
    h = params["lin1_w"].shape[1]
    c = params["lin2_w"].shape[1]

    w_in = params["conv1_w1"].astype(cdt)                               # (F_in, H)
    w_stack = jnp.concatenate(
        [params["conv1_w2"], params["conv2_w1"],
         params["conv2_w2"], params["lin1_w"]], axis=0).astype(cdt)     # (4H, H)
    w_out = (jnp.zeros((h, c_pad), jnp.float32)
             .at[:, :c].set(params["lin2_w"]).astype(cdt))              # (H, c_pad)

    biases = jnp.zeros((8, c_pad), jnp.float32)
    biases = biases.at[0, :h].set(params["conv1_b1"][0])
    biases = biases.at[1, :h].set(params["conv1_b2"][0])
    biases = biases.at[2, :h].set(params["conv2_b1"][0])
    biases = biases.at[3, :h].set(params["conv2_b2"][0])
    biases = biases.at[4, :h].set(params["lin1_b"][0])
    biases = biases.at[5, :c].set(params["lin2_b"][0])
    return {"w_in": w_in, "w_stack": w_stack, "w_out": w_out, "biases": biases}


# ------------------------------- wrapper (JAX) ---------------------------------

def gin_2l_forward(packed, a_hat, pool_mat, x, *, num_graphs, num_classes):
    """a_hat: (B, N, N) bf16, pool_mat: (B, G_pad, N) bf16, x: (B, N, F_in).
    Returns (B * num_graphs, num_classes) float32 logits."""
    cdt = jnp.bfloat16
    b_dim, n, _ = a_hat.shape
    g_pad = pool_mat.shape[1]
    f_in = x.shape[-1]
    c_pad = packed["biases"].shape[1]

    const2 = lambda b: (0, 0)   # weights: constant block -> DMA'd once, VMEM-resident

    out_pad = pl.pallas_call(
        _gin2l_kernel,
        out_shape=jax.ShapeDtypeStruct((b_dim, g_pad, c_pad), jnp.float32),
        grid=(b_dim,),
        in_specs=[
            pl.BlockSpec((None, n, n), lambda b: (b, 0, 0)),        # a_hat
            pl.BlockSpec((None, n, f_in), lambda b: (b, 0, 0)),     # x
            pl.BlockSpec((None, g_pad, n), lambda b: (b, 0, 0)),    # pool
            pl.BlockSpec(packed["w_in"].shape, const2),
            pl.BlockSpec(packed["w_stack"].shape, const2),
            pl.BlockSpec(packed["w_out"].shape, const2),
            pl.BlockSpec(packed["biases"].shape, const2),
        ],
        out_specs=pl.BlockSpec((None, g_pad, c_pad), lambda b: (b, 0, 0)),
        compiler_params=pltpu.CompilerParams(
            dimension_semantics=("parallel",),      # 2x on v7x (2 TCs), no-op on v5e/v6e
            vmem_limit_bytes=32 * 1024 * 1024,
        ),
    )(a_hat, x.astype(cdt), pool_mat,
      packed["w_in"], packed["w_stack"], packed["w_out"], packed["biases"])

    out = out_pad[:, :num_graphs, :num_classes]
    return out.reshape(b_dim * num_graphs, num_classes)


# ------------------------- graph-structure glue (plain JAX) --------------------

def gin_adj_dense(edge_index, num_nodes, eps=0.0, dtype=jnp.float32):
    """Dense GINConv aggregation operator: remove explicit self-loops, then
    A_hat = A + (1+eps) * I with A[dst, src] += 1 per edge (sum aggregation,
    duplicate edges accumulate — matches MessagePassing 'add')."""
    src, dst = edge_index[0], edge_index[1]
    not_self = (src != dst).astype(dtype)
    a = jnp.zeros((num_nodes, num_nodes), dtype=dtype)
    a = a.at[dst, src].add(not_self)
    return a + (1.0 + eps) * jnp.eye(num_nodes, dtype=dtype)


def mean_pool_matrix(batch, pad_graphs, dtype=jnp.float32):
    """P[g, n] = 1/|V_g| if batch[n] == g else 0, so P @ H == global_mean_pool."""
    onehot = (batch[None, :] == jnp.arange(pad_graphs)[:, None]).astype(dtype)
    counts = jnp.maximum(jnp.sum(onehot, axis=1, keepdims=True), 1.0)
    return onehot / counts


# --------------------------- pure-JAX reference (f32) ---------------------------

def gin_2l_reference(params, a_hat_f32, pool_f32, x):
    def one(xb):
        agg = a_hat_f32 @ xb
        h = jnp.maximum(agg @ params["conv1_w1"] + params["conv1_b1"], 0.0)
        h = jnp.maximum(h @ params["conv1_w2"] + params["conv1_b2"], 0.0)
        agg = a_hat_f32 @ h
        h = jnp.maximum(agg @ params["conv2_w1"] + params["conv2_b1"], 0.0)
        h = jnp.maximum(h @ params["conv2_w2"] + params["conv2_b2"], 0.0)
        pooled = pool_f32 @ h
        hid = jnp.maximum(pooled @ params["lin1_w"] + params["lin1_b"], 0.0)
        return hid @ params["lin2_w"] + params["lin2_b"]
    return jax.vmap(one)(x)


# ------------------------------------ main -------------------------------------

if __name__ == "__main__":
    # data_args: dim_node=16, dim_hidden=32, num_classes=4, model_level='graph'.
    DIM_NODE, DIM_HIDDEN, NUM_CLASSES = 16, 32, 4
    B = 8                 # graph-batches per pallas_call (grid axis)
    G_PER_BATCH = 16      # graphs per batch
    NODES_PER_GRAPH = 8
    N_NODES = G_PER_BATCH * NODES_PER_GRAPH   # 128 rows per MXU pass

    key = jax.random.PRNGKey(0)
    ks = jax.random.split(key, 8)

    # batched node features: (B, N, F_in)
    x = jax.random.normal(ks[0], (B, N_NODES, DIM_NODE), dtype=jnp.float32)

    # graph structure: ring graphs (undirected), identical per batch
    def ring_edges(offset, size):
        idx = jnp.arange(size)
        src = idx + offset
        dst = (idx + 1) % size + offset
        return jnp.stack([jnp.concatenate([src, dst]),
                          jnp.concatenate([dst, src])], axis=0)

    edge_index = jnp.concatenate(
        [ring_edges(g * NODES_PER_GRAPH, NODES_PER_GRAPH) for g in range(G_PER_BATCH)],
        axis=1)
    batch_vec = jnp.repeat(jnp.arange(G_PER_BATCH, dtype=jnp.int32), NODES_PER_GRAPH)

    def init_w(k, fan_in, fan_out):
        return (jax.random.normal(k, (fan_in, fan_out), dtype=jnp.float32)
                / jnp.sqrt(jnp.float32(fan_in)))

    params = {
        # conv1.nn = Linear(16,32) -> ReLU -> Linear(32,32) -> ReLU
        "conv1_w1": init_w(ks[1], DIM_NODE, DIM_HIDDEN),
        "conv1_b1": jnp.zeros((1, DIM_HIDDEN), jnp.float32),
        "conv1_w2": init_w(ks[2], DIM_HIDDEN, DIM_HIDDEN),
        "conv1_b2": jnp.zeros((1, DIM_HIDDEN), jnp.float32),
        # convs[0].nn = Linear(32,32) -> ReLU -> Linear(32,32) -> ReLU
        "conv2_w1": init_w(ks[3], DIM_HIDDEN, DIM_HIDDEN),
        "conv2_b1": jnp.zeros((1, DIM_HIDDEN), jnp.float32),
        "conv2_w2": init_w(ks[4], DIM_HIDDEN, DIM_HIDDEN),
        "conv2_b2": jnp.zeros((1, DIM_HIDDEN), jnp.float32),
        # ffn = Linear(32,32) -> ReLU -> Dropout -> Linear(32,4)
        "lin1_w": init_w(ks[5], DIM_HIDDEN, DIM_HIDDEN),
        "lin1_b": 0.01 * jnp.ones((1, DIM_HIDDEN), jnp.float32),
        "lin2_w": init_w(ks[6], DIM_HIDDEN, NUM_CLASSES),
        "lin2_b": 0.01 * jnp.ones((1, NUM_CLASSES), jnp.float32),
    }

    # One-time setup, OUTSIDE the jitted per-forward path:
    #   graph operators (A_hat, pool matrix) + weight packing / bf16 casts.
    a_hat_f32 = gin_adj_dense(edge_index, N_NODES, eps=0.0)              # (N, N)
    pool_f32 = mean_pool_matrix(batch_vec, G_PER_BATCH)                  # (G, N)
    a_hat_b = jnp.tile(a_hat_f32[None], (B, 1, 1)).astype(jnp.bfloat16)  # (B, N, N)
    pool_b = jnp.tile(pool_f32[None], (B, 1, 1)).astype(jnp.bfloat16)    # (B, G, N)
    packed = pack_params(params)

    fwd = jax.jit(functools.partial(gin_2l_forward,
                                    num_graphs=G_PER_BATCH,
                                    num_classes=NUM_CLASSES))
    out = fwd(packed, a_hat_b, pool_b, x)
    out = jax.block_until_ready(out)

    assert out.shape == (B * G_PER_BATCH, NUM_CLASSES), out.shape
    assert bool(jnp.all(jnp.isfinite(out)))

    # Numerical sanity check against an f32 pure-JAX reference (bf16 MXU inputs
    # => loose tolerance, documented correctness trade-off).
    ref = gin_2l_reference(params, a_hat_f32, pool_f32, x).reshape(out.shape)
    max_err = float(jnp.max(jnp.abs(out - ref)))
    assert max_err < 0.5, f"max abs err vs f32 reference too large: {max_err}"

    print("KERNEL_OK")
</pallas_src>

<mosaic_0001>
module attributes {stable_mosaic.version = 11 : i64} {
  func.func @_gin2l_kernel(%arg0: i32, %arg1: memref<1x128x128xbf16, #tpu.memory_space<vmem>>, %arg2: memref<1x128x16xbf16, #tpu.memory_space<vmem>>, %arg3: memref<1x16x128xbf16, #tpu.memory_space<vmem>>, %arg4: memref<16x32xbf16, #tpu.memory_space<vmem>>, %arg5: memref<128x32xbf16, #tpu.memory_space<vmem>>, %arg6: memref<32x128xbf16, #tpu.memory_space<vmem>>, %arg7: memref<8x128xf32, #tpu.memory_space<vmem>>, %arg8: memref<1x16x128xf32, #tpu.memory_space<vmem>>) attributes {dimension_semantics = [#tpu.dimension_semantics<parallel>], iteration_bounds = array<i64: 8>, scalar_prefetch = 0 : i64, scratch_operands = 0 : i64, tpu.core_type = #tpu.core_type<tc>, window_params = [{transform_indices = @transform_0, window_bounds = array<i64: 1, 128, 128>}, {transform_indices = @transform_1, window_bounds = array<i64: 1, 128, 16>}, {transform_indices = @transform_2, window_bounds = array<i64: 1, 16, 128>}, {pipeline_mode = #tpu.pipeline_mode<synchronous>, transform_indices = @transform_3, window_bounds = array<i64: 16, 32>}, {pipeline_mode = #tpu.pipeline_mode<synchronous>, transform_indices = @transform_4, window_bounds = array<i64: 128, 32>}, {pipeline_mode = #tpu.pipeline_mode<synchronous>, transform_indices = @transform_5, window_bounds = array<i64: 32, 128>}, {pipeline_mode = #tpu.pipeline_mode<synchronous>, transform_indices = @transform_6, window_bounds = array<i64: 8, 128>}, {transform_indices = @transform_7, window_bounds = array<i64: 1, 16, 128>}]} {
    %c0 = arith.constant 0 : index
    %c0_0 = arith.constant 0 : index
    %c0_1 = arith.constant 0 : index
    %0 = vector.load %arg1[%c0, %c0_0, %c0_1] : memref<1x128x128xbf16, #tpu.memory_space<vmem>>, vector<1x128x128xbf16>
    %1 = vector.shape_cast %0 : vector<1x128x128xbf16> to vector<128x128xbf16>
    %c0_2 = arith.constant 0 : index
    %c0_3 = arith.constant 0 : index
    %2 = vector.load %arg7[%c0_2, %c0_3] : memref<8x128xf32, #tpu.memory_space<vmem>>, vector<8x128xf32>
    %3 = vector.extract_strided_slice %2 {offsets = [0, 0], sizes = [1, 32], strides = [1, 1]} : vector<8x128xf32> to vector<1x32xf32>
    %4 = vector.extract_strided_slice %2 {offsets = [1, 0], sizes = [1, 32], strides = [1, 1]} : vector<8x128xf32> to vector<1x32xf32>
    %5 = vector.extract_strided_slice %2 {offsets = [2, 0], sizes = [1, 32], strides = [1, 1]} : vector<8x128xf32> to vector<1x32xf32>
    %6 = vector.extract_strided_slice %2 {offsets = [3, 0], sizes = [1, 32], strides = [1, 1]} : vector<8x128xf32> to vector<1x32xf32>
    %7 = vector.extract_strided_slice %2 {offsets = [4, 0], sizes = [1, 32], strides = [1, 1]} : vector<8x128xf32> to vector<1x32xf32>
    %8 = vector.extract_strided_slice %2 {offsets = [5, 0], sizes = [1, 128], strides = [1, 1]} : vector<8x128xf32> to vector<1x128xf32>
    %c0_4 = arith.constant 0 : index
    %c0_5 = arith.constant 0 : index
    %9 = vector.load %arg5[%c0_4, %c0_5] : memref<128x32xbf16, #tpu.memory_space<vmem>>, vector<32x32xbf16>
    %c32 = arith.constant 32 : index
    %c0_6 = arith.constant 0 : index
    %10 = vector.load %arg5[%c32, %c0_6] : memref<128x32xbf16, #tpu.memory_space<vmem>>, vector<32x32xbf16>
    %c64 = arith.constant 64 : index
    %c0_7 = arith.constant 0 : index
    %11 = vector.load %arg5[%c64, %c0_7] : memref<128x32xbf16, #tpu.memory_space<vmem>>, vector<32x32xbf16>
    %c96 = arith.constant 96 : index
    %c0_8 = arith.constant 0 : index
    %12 = vector.load %arg5[%c96, %c0_8] : memref<128x32xbf16, #tpu.memory_space<vmem>>, vector<32x32xbf16>
    %c0_9 = arith.constant 0 : index
    %c0_10 = arith.constant 0 : index
    %c0_11 = arith.constant 0 : index
    %13 = vector.load %arg2[%c0_9, %c0_10, %c0_11] : memref<1x128x16xbf16, #tpu.memory_space<vmem>>, vector<1x128x16xbf16>
    %14 = vector.shape_cast %13 : vector<1x128x16xbf16> to vector<128x16xbf16>
    %cst = arith.constant dense<0.000000e+00> : vector<128x16xf32>
    %15 = tpu.matmul %1, %14, %cst {dimension_numbers = #tpu.dot_dimension_numbers<[1], [0], [0], [1], [0, 0, 1, 1], [], []>} : vector<128x128xbf16>, vector<128x16xbf16>, vector<128x16xf32> -> vector<128x16xf32>
    %16 = arith.truncf %15 : vector<128x16xf32> to vector<128x16xbf16>
    %c0_12 = arith.constant 0 : index
    %c0_13 = arith.constant 0 : index
    %17 = vector.load %arg4[%c0_12, %c0_13] : memref<16x32xbf16, #tpu.memory_space<vmem>>, vector<16x32xbf16>
    %cst_14 = arith.constant dense<0.000000e+00> : vector<128x32xf32>
    %18 = tpu.matmul %16, %17, %cst_14 {dimension_numbers = #tpu.dot_dimension_numbers<[1], [0], [0], [1], [0, 0, 1, 1], [], []>} : vector<128x16xbf16>, vector<16x32xbf16>, vector<128x32xf32> -> vector<128x32xf32>
    %19 = vector.broadcast %3 : vector<1x32xf32> to vector<128x32xf32>
    %20 = arith.addf %18, %19 : vector<128x32xf32>
    %cst_15 = arith.constant 0.000000e+00 : f32
    %21 = vector.broadcast %cst_15 : f32 to vector<128x32xf32>
    %22 = arith.maximumf %20, %21 : vector<128x32xf32>
    %23 = arith.truncf %22 : vector<128x32xf32> to vector<128x32xbf16>
    %cst_16 = arith.constant dense<0.000000e+00> : vector<128x32xf32>
    %24 = tpu.matmul %23, %9, %cst_16 {dimension_numbers = #tpu.dot_dimension_numbers<[1], [0], [0], [1], [0, 0, 1, 1], [], []>} : vector<128x32xbf16>, vector<32x32xbf16>, vector<128x32xf32> -> vector<128x32xf32>
    %25 = vector.broadcast %4 : vector<1x32xf32> to vector<128x32xf32>
    %26 = arith.addf %24, %25 : vector<128x32xf32>
    %cst_17 = arith.constant 0.000000e+00 : f32
    %27 = vector.broadcast %cst_17 : f32 to vector<128x32xf32>
    %28 = arith.maximumf %26, %27 : vector<128x32xf32>
    %29 = arith.truncf %28 : vector<128x32xf32> to vector<128x32xbf16>
    %cst_18 = arith.constant dense<0.000000e+00> : vector<128x32xf32>
    %30 = tpu.matmul %1, %29, %cst_18 {dimension_numbers = #tpu.dot_dimension_numbers<[1], [0], [0], [1], [0, 0, 1, 1], [], []>} : vector<128x128xbf16>, vector<128x32xbf16>, vector<128x32xf32> -> vector<128x32xf32>
    %31 = arith.truncf %30 : vector<128x32xf32> to vector<128x32xbf16>
    %cst_19 = arith.constant dense<0.000000e+00> : vector<128x32xf32>
    %32 = tpu.matmul %31, %10, %cst_19 {dimension_numbers = #tpu.dot_dimension_numbers<[1], [0], [0], [1], [0, 0, 1, 1], [], []>} : vector<128x32xbf16>, vector<32x32xbf16>, vector<128x32xf32> -> vector<128x32xf32>
    %33 = vector.broadcast %5 : vector<1x32xf32> to vector<128x32xf32>
    %34 = arith.addf %32, %33 : vector<128x32xf32>
    %cst_20 = arith.constant 0.000000e+00 : f32
    %35 = vector.broadcast %cst_20 : f32 to vector<128x32xf32>
    %36 = arith.maximumf %34, %35 : vector<128x32xf32>
    %37 = arith.truncf %36 : vector<128x32xf32> to vector<128x32xbf16>
    %cst_21 = arith.constant dense<0.000000e+00> : vector<128x32xf32>
    %38 = tpu.matmul %37, %11, %cst_21 {dimension_numbers = #tpu.dot_dimension_numbers<[1], [0], [0], [1], [0, 0, 1, 1], [], []>} : vector<128x32xbf16>, vector<32x32xbf16>, vector<128x32xf32> -> vector<128x32xf32>
    %39 = vector.broadcast %6 : vector<1x32xf32> to vector<128x32xf32>
    %40 = arith.addf %38, %39 : vector<128x32xf32>
    %cst_22 = arith.constant 0.000000e+00 : f32
    %41 = vector.broadcast %cst_22 : f32 to vector<128x32xf32>
    %42 = arith.maximumf %40, %41 : vector<128x32xf32>
    %c0_23 = arith.constant 0 : index
    %c0_24 = arith.constant 0 : index
    %c0_25 = arith.constant 0 : index
    %43 = vector.load %arg3[%c0_23, %c0_24, %c0_25] : memref<1x16x128xbf16, #tpu.memory_space<vmem>>, vector<1x16x128xbf16>
    %44 = vector.shape_cast %43 : vector<1x16x128xbf16> to vector<16x128xbf16>
    %45 = arith.truncf %42 : vector<128x32xf32> to vector<128x32xbf16>
    %cst_26 = arith.constant dense<0.000000e+00> : vector<16x32xf32>
    %46 = tpu.matmul %44, %45, %cst_26 {dimension_numbers = #tpu.dot_dimension_numbers<[1], [0], [0], [1], [0, 0, 1, 1], [], []>} : vector<16x128xbf16>, vector<128x32xbf16>, vector<16x32xf32> -> vector<16x32xf32>
    %47 = arith.truncf %46 : vector<16x32xf32> to vector<16x32xbf16>
    %cst_27 = arith.constant dense<0.000000e+00> : vector<16x32xf32>
    %48 = tpu.matmul %47, %12, %cst_27 {dimension_numbers = #tpu.dot_dimension_numbers<[1], [0], [0], [1], [0, 0, 1, 1], [], []>} : vector<16x32xbf16>, vector<32x32xbf16>, vector<16x32xf32> -> vector<16x32xf32>
    %49 = vector.broadcast %7 : vector<1x32xf32> to vector<16x32xf32>
    %50 = arith.addf %48, %49 : vector<16x32xf32>
    %cst_28 = arith.constant 0.000000e+00 : f32
    %51 = vector.broadcast %cst_28 : f32 to vector<16x32xf32>
    %52 = arith.maximumf %50, %51 : vector<16x32xf32>
    %53 = arith.truncf %52 : vector<16x32xf32> to vector<16x32xbf16>
    %c0_29 = arith.constant 0 : index
    %c0_30 = arith.constant 0 : index
    %54 = vector.load %arg6[%c0_29, %c0_30] : memref<32x128xbf16, #tpu.memory_space<vmem>>, vector<32x128xbf16>
    %cst_31 = arith.constant dense<0.000000e+00> : vector<16x128xf32>
    %55 = tpu.matmul %53, %54, %cst_31 {dimension_numbers = #tpu.dot_dimension_numbers<[1], [0], [0], [1], [0, 0, 1, 1], [], []>} : vector<16x32xbf16>, vector<32x128xbf16>, vector<16x128xf32> -> vector<16x128xf32>
    %56 = vector.broadcast %8 : vector<1x128xf32> to vector<16x128xf32>
    %57 = arith.addf %55, %56 : vector<16x128xf32>
    %c0_32 = arith.constant 0 : index
    %c0_33 = arith.constant 0 : index
    %c0_34 = arith.constant 0 : index
    %58 = vector.load %arg8[%c0_32, %c0_33, %c0_34] : memref<1x16x128xf32, #tpu.memory_space<vmem>>, vector<1x16x128xf32>
    %59 = vector.shape_cast %58 : vector<1x16x128xf32> to vector<16x128xf32>
    %60 = vector.shape_cast %57 : vector<16x128xf32> to vector<1x16x128xf32>
    tpu.vector_store %arg8[%c0_32, %c0_33, %c0_34], %60 {strides = array<i32>} : memref<1x16x128xf32, #tpu.memory_space<vmem>>, vector<1x16x128xf32>,
    return
  }
  func.func @transform_0(%arg0: i32) -> (i32, i32, i32) {
    %c0_i32 = arith.constant 0 : i32
    %c0_i32_0 = arith.constant 0 : i32
    %c0_i32_1 = arith.constant 0 : i32
    return %arg0, %c0_i32, %c0_i32_0 : i32, i32, i32
  }
  func.func @transform_1(%arg0: i32) -> (i32, i32, i32) {
    %c0_i32 = arith.constant 0 : i32
    %c0_i32_0 = arith.constant 0 : i32
    %c0_i32_1 = arith.constant 0 : i32
    return %arg0, %c0_i32, %c0_i32_0 : i32, i32, i32
  }
  func.func @transform_2(%arg0: i32) -> (i32, i32, i32) {
    %c0_i32 = arith.constant 0 : i32
    %c0_i32_0 = arith.constant 0 : i32
    %c0_i32_1 = arith.constant 0 : i32
    return %arg0, %c0_i32, %c0_i32_0 : i32, i32, i32
  }
  func.func @transform_3(%arg0: i32) -> (i32, i32) {
    %c0_i32 = arith.constant 0 : i32
    %c0_i32_0 = arith.constant 0 : i32
    %c0_i32_1 = arith.constant 0 : i32
    return %c0_i32, %c0_i32_0 : i32, i32
  }
  func.func @transform_4(%arg0: i32) -> (i32, i32) {
    %c0_i32 = arith.constant 0 : i32
    %c0_i32_0 = arith.constant 0 : i32
    %c0_i32_1 = arith.constant 0 : i32
    return %c0_i32, %c0_i32_0 : i32, i32
  }
  func.func @transform_5(%arg0: i32) -> (i32, i32) {
    %c0_i32 = arith.constant 0 : i32
    %c0_i32_0 = arith.constant 0 : i32
    %c0_i32_1 = arith.constant 0 : i32
    return %c0_i32, %c0_i32_0 : i32, i32
  }
  func.func @transform_6(%arg0: i32) -> (i32, i32) {
    %c0_i32 = arith.constant 0 : i32
    %c0_i32_0 = arith.constant 0 : i32
    %c0_i32_1 = arith.constant 0 : i32
    return %c0_i32, %c0_i32_0 : i32, i32
  }
  func.func @transform_7(%arg0: i32) -> (i32, i32, i32) {
    %c0_i32 = arith.constant 0 : i32
    %c0_i32_0 = arith.constant 0 : i32
    %c0_i32_1 = arith.constant 0 : i32
    return %arg0, %c0_i32, %c0_i32_0 : i32, i32, i32
  }
}

</mosaic_0001>

<llo_original>
// kernel: gin_2l_forward.1
$region0: #{gin_2l_forward.1}
  #allocation0 [shape = 'u32[]', space=smem, size = 0x4, offset = 0x4, fixed_abs, tag = 'smem constant byte address 0x4 - core index']
  #allocation1 [shape = 'u32[144,128]{1,0:T(1,128)}', space=vmem, size = 0x12000, scoped, tag = 'internal scratch']
  %s0 = inlined_call_operand.vmem [shape: bf16[8,128,128], index: 0, kind: input, shape index: {}]
  %s1 = inlined_call_operand.vmem [shape: bf16[8,128,16], index: 1, kind: input, shape index: {}]
  %s2 = inlined_call_operand.vmem [shape: bf16[8,16,128], index: 2, kind: input, shape index: {}]
  %s3 = inlined_call_operand.vmem [shape: bf16[16,32], index: 3, kind: input, shape index: {}]
  %s4 = inlined_call_operand.vmem [shape: bf16[128,32], index: 4, kind: input, shape index: {}]
  %s5 = inlined_call_operand.vmem [shape: bf16[32,128], index: 5, kind: input, shape index: {}]
  %s6 = inlined_call_operand.vmem [shape: f32[8,128], index: 6, kind: input, shape index: {}]
  %s7 = inlined_call_operand.vmem [shape: f32[8,16,128], index: 7, kind: output, shape index: {}]
  %s8 = sld [smem:[#allocation0]]
  $region61: #{gin_2l_forward.1} parent=0
    _
  %s10 = ssub.s32 1, %s8
  %s11 = scalar_select 0, %s10, %s8
  loop: start=0, step=1, limit=10
  $region2: #{gin_2l_forward.1} parent=0 // loop_pre_header
    _
  $region3: #{gin_2l_forward.1} parent=0 // loop_header
    %s13 = sphi 0, %s17
    %p14 = scmp.ge.s32.totalorder %s13, 10
    %s23 = sphi 0, %s25
    %s26 = sphi 0, %s23
    %s27 = sphi 0, %s26
    %s43 = sphi 0, %s27
    %s49 = sphi 0, %s51
    %s52 = sphi 0, %s49
    %s53 = sphi 0, %s52
    %s69 = sphi 0, %s53
    %s75 = sphi 0, %s77
    %s78 = sphi 0, %s75
    %s79 = sphi 0, %s78
    %s95 = sphi 0, %s79
    %s99 = sphi 0, %s99
    %s101 = sphi 0, %s99
    %s102 = sphi 0, %s101
    %s116 = sphi 0, %s102
    %s120 = sphi 0, %s120
    %s122 = sphi 0, %s120
    %s123 = sphi 0, %s122
    %s137 = sphi 0, %s123
    %s141 = sphi 0, %s141
    %s143 = sphi 0, %s141
    %s144 = sphi 0, %s143
    %s158 = sphi 0, %s144
    %s162 = sphi 0, %s162
    %s164 = sphi 0, %s162
    %s165 = sphi 0, %s164
    %s179 = sphi 0, %s165
    %s185 = sphi 0, %s187
    %s188 = sphi 0, %s185
    %s189 = sphi 0, %s188
    %s205 = sphi 0, %s189
  $region4: #{gin_2l_forward.1} parent=0 // loop_header_branch
    %16 = sbr.rel (%p14) target = $region8
  $region5: #{gin_2l_forward.1} parent=0 // loop_body
    %s18 = ssub.s32 %s13, 1
    %s19 = ssub.s32 %s13, 2
    %s20 = sadd.s32 %s13, 1
    %s21 = ssub.s32 %s13, %s20
    %p22 = scmp.eq.s32.totalorder %s21, 0
    %s24 = sadd.s32 %s23, 1
    %s25 = scalar_select %p22, %s23, %s24
    %p28 = pneg %p22
    %p29 = scmp.eq.s32.totalorder %s13, 7
    %p30 = por %p28, %p29
    %p31 = scmp.ne.s32.totalorder %s23, %s26
    %p32 = scmp.eq.s32.totalorder %s13, 0
    %p33 = por %p31, %p32
    %p34 = scmp.ne.s32.totalorder %s23, %s26
    %p35 = scmp.eq.s32.totalorder %s18, 7
    %p36 = por %p34, %p35
    %p37 = scmp.ne.s32.totalorder %s26, %s27
    %p38 = scmp.eq.s32.totalorder %s18, 0
    %p39 = por %p37, %p38
    %p40 = scmp.ne.s32.totalorder %s26, %s27
    %p41 = scmp.eq.s32.totalorder %s19, 7
    %p42 = por %p40, %p41
    %p44 = scmp.ne.s32.totalorder %s27, %s43
    %p45 = scmp.eq.s32.totalorder %s19, 0
    %p46 = por %p44, %p45
    %s47 = ssub.s32 %s13, %s20
    %p48 = scmp.eq.s32.totalorder %s47, 0
    %s50 = sadd.s32 %s49, 1
    %s51 = scalar_select %p48, %s49, %s50
    %p54 = pneg %p48
    %p55 = scmp.eq.s32.totalorder %s13, 7
    %p56 = por %p54, %p55
    %p57 = scmp.ne.s32.totalorder %s49, %s52
    %p58 = scmp.eq.s32.totalorder %s13, 0
    %p59 = por %p57, %p58
    %p60 = scmp.ne.s32.totalorder %s49, %s52
    %p61 = scmp.eq.s32.totalorder %s18, 7
    %p62 = por %p60, %p61
    %p63 = scmp.ne.s32.totalorder %s52, %s53
    %p64 = scmp.eq.s32.totalorder %s18, 0
    %p65 = por %p63, %p64
    %p66 = scmp.ne.s32.totalorder %s52, %s53
    %p67 = scmp.eq.s32.totalorder %s19, 7
    %p68 = por %p66, %p67
    %p70 = scmp.ne.s32.totalorder %s53, %s69
    %p71 = scmp.eq.s32.totalorder %s19, 0
    %p72 = por %p70, %p71
    %s73 = ssub.s32 %s13, %s20
    %p74 = scmp.eq.s32.totalorder %s73, 0
    %s76 = sadd.s32 %s75, 1
    %s77 = scalar_select %p74, %s75, %s76
    %p80 = pneg %p74
    %p81 = scmp.eq.s32.totalorder %s13, 7
    %p82 = por %p80, %p81
    %p83 = scmp.ne.s32.totalorder %s75, %s78
    %p84 = scmp.eq.s32.totalorder %s13, 0
    %p85 = por %p83, %p84
    %p86 = scmp.ne.s32.totalorder %s75, %s78
    %p87 = scmp.eq.s32.totalorder %s18, 7
    %p88 = por %p86, %p87
    %p89 = scmp.ne.s32.totalorder %s78, %s79
    %p90 = scmp.eq.s32.totalorder %s18, 0
    %p91 = por %p89, %p90
    %p92 = scmp.ne.s32.totalorder %s78, %s79
    %p93 = scmp.eq.s32.totalorder %s19, 7
    %p94 = por %p92, %p93
    %p96 = scmp.ne.s32.totalorder %s79, %s95
    %p97 = scmp.eq.s32.totalorder %s19, 0
    %p98 = por %p96, %p97
    %s100 = sadd.s32 %s99, 1
    %p103 = scmp.eq.s32.totalorder %s13, 7
    %p104 = scmp.ne.s32.totalorder %s99, %s101
    %p105 = scmp.eq.s32.totalorder %s13, 0
    %p106 = por %p104, %p105
    %p107 = scmp.ne.s32.totalorder %s99, %s101
    %p108 = scmp.eq.s32.totalorder %s18, 7
    %p109 = por %p107, %p108
    %p110 = scmp.ne.s32.totalorder %s101, %s102
    %p111 = scmp.eq.s32.totalorder %s18, 0
    %p112 = por %p110, %p111
    %p113 = scmp.ne.s32.totalorder %s101, %s102
    %p114 = scmp.eq.s32.totalorder %s19, 7
    %p115 = por %p113, %p114
    %p117 = scmp.ne.s32.totalorder %s102, %s116
    %p118 = scmp.eq.s32.totalorder %s19, 0
    %p119 = por %p117, %p118
    %s121 = sadd.s32 %s120, 1
    %p124 = scmp.eq.s32.totalorder %s13, 7
    %p125 = scmp.ne.s32.totalorder %s120, %s122
    %p126 = scmp.eq.s32.totalorder %s13, 0
    %p127 = por %p125, %p126
    %p128 = scmp.ne.s32.totalorder %s120, %s122
    %p129 = scmp.eq.s32.totalorder %s18, 7
    %p130 = por %p128, %p129
    %p131 = scmp.ne.s32.totalorder %s122, %s123
    %p132 = scmp.eq.s32.totalorder %s18, 0
    %p133 = por %p131, %p132
    %p134 = scmp.ne.s32.totalorder %s122, %s123
    %p135 = scmp.eq.s32.totalorder %s19, 7
    %p136 = por %p134, %p135
    %p138 = scmp.ne.s32.totalorder %s123, %s137
    %p139 = scmp.eq.s32.totalorder %s19, 0
    %p140 = por %p138, %p139
    %s142 = sadd.s32 %s141, 1
    %p145 = scmp.eq.s32.totalorder %s13, 7
    %p146 = scmp.ne.s32.totalorder %s141, %s143
    %p147 = scmp.eq.s32.totalorder %s13, 0
    %p148 = por %p146, %p147
    %p149 = scmp.ne.s32.totalorder %s141, %s143
    %p150 = scmp.eq.s32.totalorder %s18, 7
    %p151 = por %p149, %p150
    %p152 = scmp.ne.s32.totalorder %s143, %s144
    %p153 = scmp.eq.s32.totalorder %s18, 0
    %p154 = por %p152, %p153
    %p155 = scmp.ne.s32.totalorder %s143, %s144
    %p156 = scmp.eq.s32.totalorder %s19, 7
    %p157 = por %p155, %p156
    %p159 = scmp.ne.s32.totalorder %s144, %s158
    %p160 = scmp.eq.s32.totalorder %s19, 0
    %p161 = por %p159, %p160
    %s163 = sadd.s32 %s162, 1
    %p166 = scmp.eq.s32.totalorder %s13, 7
    %p167 = scmp.ne.s32.totalorder %s162, %s164
    %p168 = scmp.eq.s32.totalorder %s13, 0
    %p169 = por %p167, %p168
    %p170 = scmp.ne.s32.totalorder %s162, %s164
    %p171 = scmp.eq.s32.totalorder %s18, 7
    %p172 = por %p170, %p171
    %p173 = scmp.ne.s32.totalorder %s164, %s165
    %p174 = scmp.eq.s32.totalorder %s18, 0
    %p175 = por %p173, %p174
    %p176 = scmp.ne.s32.totalorder %s164, %s165
    %p177 = scmp.eq.s32.totalorder %s19, 7
    %p178 = por %p176, %p177
    %p180 = scmp.ne.s32.totalorder %s165, %s179
    %p181 = scmp.eq.s32.totalorder %s19, 0
    %p182 = por %p180, %p181
    %s183 = ssub.s32 %s13, %s20
    %p184 = scmp.eq.s32.totalorder %s183, 0
    %s186 = sadd.s32 %s185, 1
    %s187 = scalar_select %p184, %s185, %s186
    %p190 = pneg %p184
    %p191 = scmp.eq.s32.totalorder %s13, 7
    %p192 = por %p190, %p191
    %p193 = scmp.ne.s32.totalorder %s185, %s188
    %p194 = scmp.eq.s32.totalorder %s13, 0
    %p195 = por %p193, %p194
    %p196 = scmp.ne.s32.totalorder %s185, %s188
    %p197 = scmp.eq.s32.totalorder %s18, 7
    %p198 = por %p196, %p197
    %p199 = scmp.ne.s32.totalorder %s188, %s189
    %p200 = scmp.eq.s32.totalorder %s18, 0
    %p201 = por %p199, %p200
    %p202 = scmp.ne.s32.totalorder %s188, %s189
    %p203 = scmp.eq.s32.totalorder %s19, 7
    %p204 = por %p202, %p203
    %p206 = scmp.ne.s32.totalorder %s189, %s205
    %p207 = scmp.eq.s32.totalorder %s19, 0
    %p208 = por %p206, %p207
    %p209 = scmp.le.s32.totalorder 1, %s13
    %p210 = scmp.lt.s32.totalorder %s13, 9
    %p211 = pnand %p209, %p210
    %p212 = pneg %p211
    // Predicated region
    $region9: #{gin_2l_forward.1} parent=5 // pred_check
      _
    $region10: #{gin_2l_forward.1} parent=5 // pred_check_branch
      %214 = sbr.rel (%p211) target = $region12
    $region11: #{gin_2l_forward.1} parent=5 // pred_region
      %s215 = ssub.s32 %s13, 1
      // Predicated region
      $region13: #{gin_2l_forward.1} parent=11 // pred_check
        %p216 = pneg %p112
      $region14: #{gin_2l_forward.1} parent=11 // pred_check_branch
        %218 = sbr.rel (%p216) target = $region16
      $region15: #{gin_2l_forward.1} parent=11 // pred_region
        _
      $region16: #{gin_2l_forward.1} parent=11 // pred_fallthru
        _
      // Predicated region
      $region17: #{gin_2l_forward.1} parent=11 // pred_check
        %p219 = pneg %p133
      $region18: #{gin_2l_forward.1} parent=11 // pred_check_branch
        %221 = sbr.rel (%p219) target = $region20
      $region19: #{gin_2l_forward.1} parent=11 // pred_region
        _
      $region20: #{gin_2l_forward.1} parent=11 // pred_fallthru
        _
      // Predicated region
      $region21: #{gin_2l_forward.1} parent=11 // pred_check
        %p222 = pneg %p154
      $region22: #{gin_2l_forward.1} parent=11 // pred_check_branch
        %224 = sbr.rel (%p222) target = $region24
      $region23: #{gin_2l_forward.1} parent=11 // pred_region
        _
      $region24: #{gin_2l_forward.1} parent=11 // pred_fallthru
        _
      // Predicated region
      $region25: #{gin_2l_forward.1} parent=11 // pred_check
        %p225 = pneg %p175
      $region26: #{gin_2l_forward.1} parent=11 // pred_check_branch
        %227 = sbr.rel (%p225) target = $region28
      $region27: #{gin_2l_forward.1} parent=11 // pred_region
        _
      $region28: #{gin_2l_forward.1} parent=11 // pred_fallthru
        _
    $region12: #{gin_2l_forward.1} parent=5 // pred_fallthru
      _
    %p228 = scmp.lt.s32.totalorder %s13, 8
    // Predicated region
    $region29: #{gin_2l_forward.1} parent=5 // pred_check
      %p229 = pneg %p228
    $region30: #{gin_2l_forward.1} parent=5 // pred_check_branch
      %231 = sbr.rel (%p229) target = $region32
    $region31: #{gin_2l_forward.1} parent=5 // pred_region
      // Predicated region
      $region33: #{gin_2l_forward.1} parent=31 // pred_check
        %p232 = pneg %p33
      $region34: #{gin_2l_forward.1} parent=31 // pred_check_branch
        %234 = sbr.rel (%p232) target = $region36
      $region35: #{gin_2l_forward.1} parent=31 // pred_region
        %p235 = scmp.lt.s32.totalorder %s13, 7
        %s236 = scalar_select %p235, %s13, 7
        %s237 = smul.addr %s236, 16
        %s238 = smul.addr %s237, 4
        %s239 = scalar_lea.vmem %s0, %s238
      $region36: #{gin_2l_forward.1} parent=31 // pred_fallthru
        _
      // Predicated region
      $region37: #{gin_2l_forward.1} parent=31 // pred_check
        %p240 = pneg %p59
      $region38: #{gin_2l_forward.1} parent=31 // pred_check_branch
        %242 = sbr.rel (%p240) target = $region40
      $region39: #{gin_2l_forward.1} parent=31 // pred_region
        %p243 = scmp.lt.s32.totalorder %s13, 7
        %s244 = scalar_select %p243, %s13, 7
        %s245 = smul.addr %s244, 16
        %s246 = smul.addr %s245, 4
        %s247 = scalar_lea.vmem %s1, %s246
      $region40: #{gin_2l_forward.1} parent=31 // pred_fallthru
        _
      // Predicated region
      $region41: #{gin_2l_forward.1} parent=31 // pred_check
        %p248 = pneg %p85
      $region42: #{gin_2l_forward.1} parent=31 // pred_check_branch
        %250 = sbr.rel (%p248) target = $region44
      $region43: #{gin_2l_forward.1} parent=31 // pred_region
        %p251 = scmp.lt.s32.totalorder %s13, 7
        %s252 = scalar_select %p251, %s13, 7
        %s253 = smul.addr %s252, 2
        %s254 = smul.addr %s253, 4
        %s255 = scalar_lea.vmem %s2, %s254
      $region44: #{gin_2l_forward.1} parent=31 // pred_fallthru
        _
    $region32: #{gin_2l_forward.1} parent=5 // pred_fallthru
      _
    %p256 = scmp.le.s32.totalorder 1, %s13
    %p257 = scmp.lt.s32.totalorder %s13, 9
    %p258 = pnand %p256, %p257
    %p259 = pneg %p258
    // Predicated region
    $region45: #{gin_2l_forward.1} parent=5 // pred_check
      _
    $region46: #{gin_2l_forward.1} parent=5 // pred_check_branch
      %261 = sbr.rel (%p258) target = $region48
    $region47: #{gin_2l_forward.1} parent=5 // pred_region
      %s262 = ssub.s32 %s13, 1
      %p263 = scmp.lt.s32.totalorder %s18, 7
      %s264 = scalar_select %p263, %s18, 7
      %s265 = smul.addr %s264, 16
      %s266 = smul.addr %s265, 4
      %s267 = scalar_lea.vmem %s0, %s266
      %p268 = pneg %p39
      %p269 = pneg %p36
      %p270 = scmp.lt.s32.totalorder %s18, 7
      %s271 = scalar_select %p270, %s18, 7
      %s272 = smul.addr %s271, 16
      %s273 = smul.addr %s272, 4
      %s274 = scalar_lea.vmem %s1, %s273
      %p275 = pneg %p65
      %p276 = pneg %p62
      %p277 = scmp.lt.s32.totalorder %s18, 7
      %s278 = scalar_select %p277, %s18, 7
      %s279 = smul.addr %s278, 2
      %s280 = smul.addr %s279, 4
      %s281 = scalar_lea.vmem %s2, %s280
      %p282 = pneg %p91
      %p283 = pneg %p88
      %p284 = pneg %p112
      %p285 = pneg %p109
      %p286 = pneg %p133
      %p287 = pneg %p130
      %p288 = pneg %p154
      %p289 = pneg %p151
      %p290 = pneg %p175
      %p291 = pneg %p172
      %p292 = pneg %p201
      %p293 = pneg %p198
      %p294 = scmp.lt.s32.totalorder %s18, 7
      %s295 = scalar_select %p294, %s18, 7
      %s296 = smul.addr %s295, 2
      %s297 = smul.addr %s296, 8
      %s298 = scalar_lea.vmem %s7, %s297
      %p299 = scmp.lt.s32.totalorder %s18, 7
      %s300 = scalar_select %p299, %s18, 7
      %s301 = smul.addr %s300, 16
      %s302 = smul.addr %s301, 4
      %s303 = scalar_lea.vmem %s0, %s302
      %p304 = scmp.lt.s32.totalorder %s18, 7
      %s305 = scalar_select %p304, %s18, 7
      %s306 = smul.addr %s305, 16
      %s307 = smul.addr %s306, 4
      %s308 = scalar_lea.vmem %s1, %s307
      %p309 = scmp.lt.s32.totalorder %s18, 7
      %s310 = scalar_select %p309, %s18, 7
      %s311 = smul.addr %s310, 2
      %s312 = smul.addr %s311, 4
      %s313 = scalar_lea.vmem %s2, %s312
      %p314 = scmp.lt.s32.totalorder %s18, 7
      %s315 = scalar_select %p314, %s18, 7
      %s316 = smul.addr %s315, 2
      %s317 = smul.addr %s316, 8
      %s318 = scalar_lea.vmem %s7, %s317
      %v320 = vld [vmem:[%s303] sm:$0xf]
      %v321 = vld [vmem:[%s303 + $0x4] sm:$0xf]
      %v322 = vld [vmem:[%s303 + $0x8] sm:$0xf]
      %v323 = vld [vmem:[%s303 + $0xc] sm:$0xf]
      %v324 = vld [vmem:[%s303 + $0x10] sm:$0xf]
      %v325 = vld [vmem:[%s303 + $0x14] sm:$0xf]
      %v326 = vld [vmem:[%s303 + $0x18] sm:$0xf]
      %v327 = vld [vmem:[%s303 + $0x1c] sm:$0xf]
      %v328 = vld [vmem:[%s303 + $0x20] sm:$0xf]
      %v329 = vld [vmem:[%s303 + $0x24] sm:$0xf]
      %v330 = vld [vmem:[%s303 + $0x28] sm:$0xf]
      %v331 = vld [vmem:[%s303 + $0x2c] sm:$0xf]
      %v332 = vld [vmem:[%s303 + $0x30] sm:$0xf]
      %v333 = vld [vmem:[%s303 + $0x34] sm:$0xf]
      %v334 = vld [vmem:[%s303 + $0x38] sm:$0xf]
      %v335 = vld [vmem:[%s303 + $0x3c] sm:$0xf]
      %v336 = vld [vmem:[%s6] sm:$0xff]
      %v337 = vld [vmem:[%s4] sm:$0xf]
      %v338 = vld [vmem:[%s4 + $0x4] sm:$0xf]
      %v339 = vld [vmem:[%s4 + $0x8] sm:$0xf]
      %v340 = vld [vmem:[%s4 + $0xc] sm:$0xf]
      %v341 = vld [vmem:[%s4 + $0x10] sm:$0xf]
      %v342 = vld [vmem:[%s4 + $0x14] sm:$0xf]
      %v343 = vld [vmem:[%s4 + $0x18] sm:$0xf]
      %v344 = vld [vmem:[%s4 + $0x1c] sm:$0xf]
      %v345 = vld [vmem:[%s4 + $0x20] sm:$0xf]
      %v346 = vld [vmem:[%s4 + $0x24] sm:$0xf]
      %v347 = vld [vmem:[%s4 + $0x28] sm:$0xf]
      %v348 = vld [vmem:[%s4 + $0x2c] sm:$0xf]
      %v349 = vld [vmem:[%s4 + $0x30] sm:$0xf]
      %v350 = vld [vmem:[%s4 + $0x34] sm:$0xf]
      %v351 = vld [vmem:[%s4 + $0x38] sm:$0xf]
      %v352 = vld [vmem:[%s4 + $0x3c] sm:$0xf]
      %v353 = vld [vmem:[%s308] sm:$0xf]
      %v354 = vld [vmem:[%s308 + $0x4] sm:$0xf]
      %v355 = vld [vmem:[%s308 + $0x8] sm:$0xf]
      %v356 = vld [vmem:[%s308 + $0xc] sm:$0xf]
      %v357 = vld [vmem:[%s308 + $0x10] sm:$0xf]
      %v358 = vld [vmem:[%s308 + $0x14] sm:$0xf]
      %v359 = vld [vmem:[%s308 + $0x18] sm:$0xf]
      %v360 = vld [vmem:[%s308 + $0x1c] sm:$0xf]
      %v361 = vld [vmem:[%s308 + $0x20] sm:$0xf]
      %v362 = vld [vmem:[%s308 + $0x24] sm:$0xf]
      %v363 = vld [vmem:[%s308 + $0x28] sm:$0xf]
      %v364 = vld [vmem:[%s308 + $0x2c] sm:$0xf]
      %v365 = vld [vmem:[%s308 + $0x30] sm:$0xf]
      %v366 = vld [vmem:[%s308 + $0x34] sm:$0xf]
      %v367 = vld [vmem:[%s308 + $0x38] sm:$0xf]
      %v368 = vld [vmem:[%s308 + $0x3c] sm:$0xf]
      %v385 = vunpack.c.l.b16 %v320
      %v386 = vunpack.c.l.b16 %v321
      %v387 = vunpack.c.l.b16 %v322
      %v388 = vunpack.c.l.b16 %v323
      %v389 = vunpack.c.l.b16 %v324
      %v390 = vunpack.c.l.b16 %v325
      %v391 = vunpack.c.l.b16 %v326
      %v392 = vunpack.c.l.b16 %v327
      %v393 = vunpack.c.l.b16 %v328
      %v394 = vunpack.c.l.b16 %v329
      %v395 = vunpack.c.l.b16 %v330
      %v396 = vunpack.c.l.b16 %v331
      %v397 = vunpack.c.l.b16 %v332
      %v398 = vunpack.c.l.b16 %v333
      %v399 = vunpack.c.l.b16 %v334
      %v400 = vunpack.c.l.b16 %v335
      %v401 = vpack.c.b16 %v386, %v385
      %v402 = vpack.c.b16 %v388, %v387
      %v403 = vpack.c.b16 %v390, %v389
      %v404 = vpack.c.b16 %v392, %v391
      %v405 = vpack.c.b16 %v394, %v393
      %v406 = vpack.c.b16 %v396, %v395
      %v407 = vpack.c.b16 %v398, %v397
      %v408 = vpack.c.b16 %v400, %v399
      %v433 = vunpack.c.l.b16 %v353
      %v434 = vunpack.c.l.b16 %v354
      %v435 = vunpack.c.l.b16 %v355
      %v436 = vunpack.c.l.b16 %v356
      %v437 = vunpack.c.l.b16 %v357
      %v438 = vunpack.c.l.b16 %v358
      %v439 = vunpack.c.l.b16 %v359
      %v440 = vunpack.c.l.b16 %v360
      %v441 = vunpack.c.l.b16 %v361
      %v442 = vunpack.c.l.b16 %v362
      %v443 = vunpack.c.l.b16 %v363
      %v444 = vunpack.c.l.b16 %v364
      %v445 = vunpack.c.l.b16 %v365
      %v446 = vunpack.c.l.b16 %v366
      %v447 = vunpack.c.l.b16 %v367
      %v448 = vunpack.c.l.b16 %v368
      %v449 = vpack.c.b16 %v434, %v433
      %v450 = vpack.c.b16 %v436, %v435
      %v451 = vpack.c.b16 %v438, %v437
      %v452 = vpack.c.b16 %v440, %v439
      %v453 = vpack.c.b16 %v442, %v441
      %v454 = vpack.c.b16 %v444, %v443
      %v455 = vpack.c.b16 %v446, %v445
      %v456 = vpack.c.b16 %v448, %v447
      %465 = vmatprep.subr.bf16.mxu0 0
      %466 = vmatpush1.bf16.msra.mxu0 %v449
      %467 = vmatprep.subr.bf16.mxu0 0
      %468 = vmatpush1.bf16.msra.mxu0 %v450
      %469 = vmatprep.subr.bf16.mxu0 0
      %470 = vmatpush1.bf16.msra.mxu0 %v451
      %471 = vmatprep.subr.bf16.mxu0 0
      %472 = vmatpush1.bf16.msra.mxu0 %v452
      %473 = vmatprep.subr.bf16.mxu0 0
      %474 = vmatpush1.bf16.msra.mxu0 %v453
      %475 = vmatprep.subr.bf16.mxu0 0
      %476 = vmatpush1.bf16.msra.mxu0 %v454
      %477 = vmatprep.subr.bf16.mxu0 0
      %478 = vmatpush1.bf16.msra.mxu0 %v455
      %479 = vmatprep.subr.bf16.mxu0 0
      %480 = vmatpush1.bf16.msra.mxu0 %v456
      %481 = vmatprep.subr.bf16.mxu0 0
      %482 = vmatpush1.bf16.msra.mxu0 0
      %483 = vmatprep.subr.bf16.mxu0 0
      %484 = vmatpush1.bf16.msra.mxu0 0
      %485 = vmatprep.subr.bf16.mxu0 0
      %486 = vmatpush1.bf16.msra.mxu0 0
      %487 = vmatprep.subr.bf16.mxu0 0
      %488 = vmatpush1.bf16.msra.mxu0 0
      %489 = vmatprep.subr.bf16.mxu0 0
      %490 = vmatpush1.bf16.msra.mxu0 0
      %491 = vmatprep.subr.bf16.mxu0 0
      %492 = vmatpush1.bf16.msra.mxu0 0
      %493 = vmatprep.subr.bf16.mxu0 0
      %494 = vmatpush1.bf16.msra.mxu0 0
      %495 = vmatprep.subr.bf16.mxu0 0
      %496 = vmatpush1.bf16.msra.mxu0 0
      %497 = vmatprep.mubr.bf16.mxu0 0
      %498 = vmatmul.mubr.bf16.gmra.mrb[0].mxu0 %v401
      %v499 = vpop.f32.mrb[0].mxu0
      %v500 = vadd.f32 0.0, %v499
      %v501 = vpop.f32.mrb[0].mxu0
      %v502 = vpop.f32.mrb[0].mxu0
      %v503 = vadd.f32 0.0, %v502
      %v504 = vpop.f32.mrb[0].mxu0
      %505 = vmatprep.mubr.bf16.mxu0 0
      %506 = vmatmul.mubr.bf16.gmra.mrb[0].mxu0 %v402
      %v507 = vpop.f32.mrb[0].mxu0
      %v508 = vadd.f32 0.0, %v507
      %v509 = vpop.f32.mrb[0].mxu0
      %v510 = vpop.f32.mrb[0].mxu0
      %v511 = vadd.f32 0.0, %v510
      %v512 = vpop.f32.mrb[0].mxu0
      %513 = vmatprep.mubr.bf16.mxu0 0
      %514 = vmatmul.mubr.bf16.gmra.mrb[0].mxu0 %v403
      %v515 = vpop.f32.mrb[0].mxu0
      %v516 = vadd.f32 0.0, %v515
      %v517 = vpop.f32.mrb[0].mxu0
      %v518 = vpop.f32.mrb[0].mxu0
      %v519 = vadd.f32 0.0, %v518
      %v520 = vpop.f32.mrb[0].mxu0
      %521 = vmatprep.mubr.bf16.mxu0 0
      %522 = vmatmul.mubr.bf16.gmra.mrb[0].mxu0 %v404
      %v523 = vpop.f32.mrb[0].mxu0
      %v524 = vadd.f32 0.0, %v523
      %v525 = vpop.f32.mrb[0].mxu0
      %v526 = vpop.f32.mrb[0].mxu0
      %v527 = vadd.f32 0.0, %v526
      %v528 = vpop.f32.mrb[0].mxu0
      %529 = vmatprep.mubr.bf16.mxu0 0
      %530 = vmatmul.mubr.bf16.gmra.mrb[0].mxu0 %v405
      %v531 = vpop.f32.mrb[0].mxu0
      %v532 = vadd.f32 0.0, %v531
      %v533 = vpop.f32.mrb[0].mxu0
      %v534 = vpop.f32.mrb[0].mxu0
      %v535 = vadd.f32 0.0, %v534
      %v536 = vpop.f32.mrb[0].mxu0
      %537 = vmatprep.mubr.bf16.mxu0 0
      %538 = vmatmul.mubr.bf16.gmra.mrb[0].mxu0 %v406
      %v539 = vpop.f32.mrb[0].mxu0
      %v540 = vadd.f32 0.0, %v539
      %v541 = vpop.f32.mrb[0].mxu0
      %v542 = vpop.f32.mrb[0].mxu0
      %v543 = vadd.f32 0.0, %v542
      %v544 = vpop.f32.mrb[0].mxu0
      %545 = vmatprep.mubr.bf16.mxu0 0
      %546 = vmatmul.mubr.bf16.gmra.mrb[0].mxu0 %v407
      %v547 = vpop.f32.mrb[0].mxu0
      %v548 = vadd.f32 0.0, %v547
      %v549 = vpop.f32.mrb[0].mxu0
      %v550 = vpop.f32.mrb[0].mxu0
      %v551 = vadd.f32 0.0, %v550
      %v552 = vpop.f32.mrb[0].mxu0
      %553 = vmatprep.mubr.bf16.mxu0 0
      %554 = vmatmul.mubr.bf16.gmra.mrb[0].mxu0 %v408
      %v555 = vpop.f32.mrb[0].mxu0
      %v556 = vadd.f32 0.0, %v555
      %v557 = vpop.f32.mrb[0].mxu0
      %v558 = vpop.f32.mrb[0].mxu0
      %v559 = vadd.f32 0.0, %v558
      %v560 = vpop.f32.mrb[0].mxu0
      %561 = vdwg.mxu0
      %v562 = vpack.c.bf16 %v503, %v500
      %v563 = vpack.c.bf16 %v511, %v508
      %v564 = vpack.c.bf16 %v519, %v516
      %v565 = vpack.c.bf16 %v527, %v524
      %v566 = vpack.c.bf16 %v535, %v532
      %v567 = vpack.c.bf16 %v543, %v540
      %v568 = vpack.c.bf16 %v551, %v548
      %v569 = vpack.c.bf16 %v559, %v556
      %v570 = vld [vmem:[%s3] sm:$0xf]
      %v571 = vld [vmem:[%s3 + $0x4] sm:$0xf]
      %v572 = vlaneseq
      %v573 = vshrl.u32 %v572, 7
      %v574 = vsub.s32 0, %v573
      %v575 = vrot.slane %v336, %v574
      %v578 = vunpack.c.l.b16 %v570
      %v579 = vunpack.c.l.b16 %v571
      %v580 = vpack.c.b16 %v579, %v578
      %vm582 = vcmask 130048
      %v584 = vsel %vm582, %v562, 0
      %v587 = vsel %vm582, %v563, 0
      %v590 = vsel %vm582, %v564, 0
      %v593 = vsel %vm582, %v565, 0
      %v596 = vsel %vm582, %v566, 0
      %v599 = vsel %vm582, %v567, 0
      %v602 = vsel %vm582, %v568, 0
      %v605 = vsel %vm582, %v569, 0
      %607 = vmatprep.subr.bf16.mxu0 0
      %608 = vmatpush1.bf16.msra.mxu0 %v580
      %609 = vmatprep.subr.bf16.mxu0 0
      %610 = vmatpush1.bf16.msra.mxu0 0
      %611 = vmatprep.subr.bf16.mxu0 0
      %612 = vmatpush1.bf16.msra.mxu0 0
      %613 = vmatprep.subr.bf16.mxu0 0
      %614 = vmatpush1.bf16.msra.mxu0 0
      %615 = vmatprep.subr.bf16.mxu0 0
      %616 = vmatpush1.bf16.msra.mxu0 0
      %617 = vmatprep.subr.bf16.mxu0 0
      %618 = vmatpush1.bf16.msra.mxu0 0
      %619 = vmatprep.subr.bf16.mxu0 0
      %620 = vmatpush1.bf16.msra.mxu0 0
      %621 = vmatprep.subr.bf16.mxu0 0
      %622 = vmatpush1.bf16.msra.mxu0 0
      %623 = vmatprep.subr.bf16.mxu0 0
      %624 = vmatpush1.bf16.msra.mxu0 0
      %625 = vmatprep.subr.bf16.mxu0 0
      %626 = vmatpush1.bf16.msra.mxu0 0
      %627 = vmatprep.subr.bf16.mxu0 0
      %628 = vmatpush1.bf16.msra.mxu0 0
      %629 = vmatprep.subr.bf16.mxu0 0
      %630 = vmatpush1.bf16.msra.mxu0 0
      %631 = vmatprep.subr.bf16.mxu0 0
      %632 = vmatpush1.bf16.msra.mxu0 0
      %633 = vmatprep.subr.bf16.mxu0 0
      %634 = vmatpush1.bf16.msra.mxu0 0
      %635 = vmatprep.subr.bf16.mxu0 0
      %636 = vmatpush1.bf16.msra.mxu0 0
      %637 = vmatprep.subr.bf16.mxu0 0
      %638 = vmatpush1.bf16.msra.mxu0 0
      %639 = vmatprep.mubr.bf16.mxu0 0
      %640 = vmatmul.mubr.bf16.gmra.mrb[0].mxu0 %v584
      %v641 = vpop.f32.mrb[0].mxu0
      %v642 = vadd.f32 %v575, %v641
      %v643 = vpop.f32.mrb[0].mxu0
      %v644 = vpop.f32.mrb[0].mxu0
      %v645 = vadd.f32 %v575, %v644
      %v646 = vpop.f32.mrb[0].mxu0
      %647 = vmatprep.mubr.bf16.mxu0 0
      %648 = vmatmul.mubr.bf16.gmra.mrb[0].mxu0 %v587
      %v649 = vpop.f32.mrb[0].mxu0
      %v650 = vadd.f32 %v575, %v649
      %v651 = vpop.f32.mrb[0].mxu0
      %v652 = vpop.f32.mrb[0].mxu0
      %v653 = vadd.f32 %v575, %v652
      %v654 = vpop.f32.mrb[0].mxu0
      %655 = vmatprep.mubr.bf16.mxu0 0
      %656 = vmatmul.mubr.bf16.gmra.mrb[0].mxu0 %v590
      %v657 = vpop.f32.mrb[0].mxu0
      %v658 = vadd.f32 %v575, %v657
      %v659 = vpop.f32.mrb[0].mxu0
      %v660 = vpop.f32.mrb[0].mxu0
      %v661 = vadd.f32 %v575, %v660
      %v662 = vpop.f32.mrb[0].mxu0
      %663 = vmatprep.mubr.bf16.mxu0 0
      %664 = vmatmul.mubr.bf16.gmra.mrb[0].mxu0 %v593
      %v665 = vpop.f32.mrb[0].mxu0
      %v666 = vadd.f32 %v575, %v665
      %v667 = vpop.f32.mrb[0].mxu0
      %v668 = vpop.f32.mrb[0].mxu0
      %v669 = vadd.f32 %v575, %v668
      %v670 = vpop.f32.mrb[0].mxu0
      %671 = vmatprep.mubr.bf16.mxu0 0
      %672 = vmatmul.mubr.bf16.gmra.mrb[0].mxu0 %v596
      %v673 = vpop.f32.mrb[0].mxu0
      %v674 = vadd.f32 %v575, %v673
      %v675 = vpop.f32.mrb[0].mxu0
      %v676 = vpop.f32.mrb[0].mxu0
      %v677 = vadd.f32 %v575, %v676
      %v678 = vpop.f32.mrb[0].mxu0
      %679 = vmatprep.mubr.bf16.mxu0 0
      %680 = vmatmul.mubr.bf16.gmra.mrb[0].mxu0 %v599
      %v681 = vpop.f32.mrb[0].mxu0
      %v682 = vadd.f32 %v575, %v681
      %v683 = vpop.f32.mrb[0].mxu0
      %v684 = vpop.f32.mrb[0].mxu0
      %v685 = vadd.f32 %v575, %v684
      %v686 = vpop.f32.mrb[0].mxu0
      %687 = vmatprep.mubr.bf16.mxu0 0
      %688 = vmatmul.mubr.bf16.gmra.mrb[0].mxu0 %v602
      %v689 = vpop.f32.mrb[0].mxu0
      %v690 = vadd.f32 %v575, %v689
      %v691 = vpop.f32.mrb[0].mxu0
      %v692 = vpop.f32.mrb[0].mxu0
      %v693 = vadd.f32 %v575, %v692
      %v694 = vpop.f32.mrb[0].mxu0
      %695 = vmatprep.mubr.bf16.mxu0 0
      %696 = vmatmul.mubr.bf16.gmra.mrb[0].mxu0 %v605
      %v697 = vpop.f32.mrb[0].mxu0
      %v698 = vadd.f32 %v575, %v697
      %v699 = vpop.f32.mrb[0].mxu0
      %v700 = vpop.f32.mrb[0].mxu0
      %v701 = vadd.f32 %v575, %v700
      %v702 = vpop.f32.mrb[0].mxu0
      %703 = vdwg.mxu0
      %v704 = vmax.f32 %v642, 0.0
      %v705 = vmax.f32 %v645, 0.0
      %v706 = vmax.f32 %v650, 0.0
      %v707 = vmax.f32 %v653, 0.0
      %v708 = vmax.f32 %v658, 0.0
      %v709 = vmax.f32 %v661, 0.0
      %v710 = vmax.f32 %v666, 0.0
      %v711 = vmax.f32 %v669, 0.0
      %v712 = vmax.f32 %v674, 0.0
      %v713 = vmax.f32 %v677, 0.0
      %v714 = vmax.f32 %v682, 0.0
      %v715 = vmax.f32 %v685, 0.0
      %v716 = vmax.f32 %v690, 0.0
      %v717 = vmax.f32 %v693, 0.0
      %v718 = vmax.f32 %v698, 0.0
      %v719 = vmax.f32 %v701, 0.0
      %v720 = vpack.c.bf16 %v705, %v704
      %v721 = vpack.c.bf16 %v707, %v706
      %v722 = vpack.c.bf16 %v709, %v708
      %v723 = vpack.c.bf16 %v711, %v710
      %v724 = vpack.c.bf16 %v713, %v712
      %v725 = vpack.c.bf16 %v715, %v714
      %v726 = vpack.c.bf16 %v717, %v716
      %v727 = vpack.c.bf16 %v719, %v718
      %v728 = vlaneseq
      %v729 = vshrl.u32 %v728, 7
      %v730 = vsub.s32 1, %v729
      %v731 = vrot.slane %v336, %v730
      %v736 = vunpack.c.l.b16 %v337
      %v737 = vunpack.c.l.b16 %v338
      %v738 = vunpack.c.l.b16 %v339
      %v739 = vunpack.c.l.b16 %v340
      %v740 = vpack.c.b16 %v737, %v736
      %v741 = vpack.c.b16 %v739, %v738
      %vm744 = vcmask 261120
      %v746 = vsel %vm744, %v720, 0
      %v749 = vsel %vm744, %v721, 0
      %v752 = vsel %vm744, %v722, 0
      %v755 = vsel %vm744, %v723, 0
      %v758 = vsel %vm744, %v724, 0
      %v761 = vsel %vm744, %v725, 0
      %v764 = vsel %vm744, %v726, 0
      %v767 = vsel %vm744, %v727, 0
      %769 = vmatprep.subr.bf16.mxu0 0
      %770 = vmatpush1.bf16.msra.mxu0 %v740
      %771 = vmatprep.subr.bf16.mxu0 0
      %772 = vmatpush1.bf16.msra.mxu0 %v741
      %773 = vmatprep.subr.bf16.mxu0 0
      %774 = vmatpush1.bf16.msra.mxu0 0
      %775 = vmatprep.subr.bf16.mxu0 0
      %776 = vmatpush1.bf16.msra.mxu0 0
      %777 = vmatprep.subr.bf16.mxu0 0
      %778 = vmatpush1.bf16.msra.mxu0 0
      %779 = vmatprep.subr.bf16.mxu0 0
      %780 = vmatpush1.bf16.msra.mxu0 0
      %781 = vmatprep.subr.bf16.mxu0 0
      %782 = vmatpush1.bf16.msra.mxu0 0
      %783 = vmatprep.subr.bf16.mxu0 0
      %784 = vmatpush1.bf16.msra.mxu0 0
      %785 = vmatprep.subr.bf16.mxu0 0
      %786 = vmatpush1.bf16.msra.mxu0 0
      %787 = vmatprep.subr.bf16.mxu0 0
      %788 = vmatpush1.bf16.msra.mxu0 0
      %789 = vmatprep.subr.bf16.mxu0 0
      %790 = vmatpush1.bf16.msra.mxu0 0
      %791 = vmatprep.subr.bf16.mxu0 0
      %792 = vmatpush1.bf16.msra.mxu0 0
      %793 = vmatprep.subr.bf16.mxu0 0
      %794 = vmatpush1.bf16.msra.mxu0 0
      %795 = vmatprep.subr.bf16.mxu0 0
      %796 = vmatpush1.bf16.msra.mxu0 0
      %797 = vmatprep.subr.bf16.mxu0 0
      %798 = vmatpush1.bf16.msra.mxu0 0
      %799 = vmatprep.subr.bf16.mxu0 0
      %800 = vmatpush1.bf16.msra.mxu0 0
      %801 = vmatprep.mubr.bf16.mxu0 0
      %802 = vmatmul.mubr.bf16.gmra.mrb[0].mxu0 %v746
      %v803 = vpop.f32.mrb[0].mxu0
      %v804 = vadd.f32 %v731, %v803
      %v805 = vpop.f32.mrb[0].mxu0
      %v806 = vpop.f32.mrb[0].mxu0
      %v807 = vadd.f32 %v731, %v806
      %v808 = vpop.f32.mrb[0].mxu0
      %809 = vmatprep.mubr.bf16.mxu0 0
      %810 = vmatmul.mubr.bf16.gmra.mrb[0].mxu0 %v749
      %v811 = vpop.f32.mrb[0].mxu0
      %v812 = vadd.f32 %v731, %v811
      %v813 = vpop.f32.mrb[0].mxu0
      %v814 = vpop.f32.mrb[0].mxu0
      %v815 = vadd.f32 %v731, %v814
      %v816 = vpop.f32.mrb[0].mxu0
      %817 = vmatprep.mubr.bf16.mxu0 0
      %818 = vmatmul.mubr.bf16.gmra.mrb[0].mxu0 %v752
      %v819 = vpop.f32.mrb[0].mxu0
      %v820 = vadd.f32 %v731, %v819
      %v821 = vpop.f32.mrb[0].mxu0
      %v822 = vpop.f32.mrb[0].mxu0
      %v823 = vadd.f32 %v731, %v822
      %v824 = vpop.f32.mrb[0].mxu0
      %825 = vmatprep.mubr.bf16.mxu0 0
      %826 = vmatmul.mubr.bf16.gmra.mrb[0].mxu0 %v755
      %v827 = vpop.f32.mrb[0].mxu0
      %v828 = vadd.f32 %v731, %v827
      %v829 = vpop.f32.mrb[0].mxu0
      %v830 = vpop.f32.mrb[0].mxu0
      %v831 = vadd.f32 %v731, %v830
      %v832 = vpop.f32.mrb[0].mxu0
      %833 = vmatprep.mubr.bf16.mxu0 0
      %834 = vmatmul.mubr.bf16.gmra.mrb[0].mxu0 %v758
      %v835 = vpop.f32.mrb[0].mxu0
      %v836 = vadd.f32 %v731, %v835
      %v837 = vpop.f32.mrb[0].mxu0
      %v838 = vpop.f32.mrb[0].mxu0
      %v839 = vadd.f32 %v731, %v838
      %v840 = vpop.f32.mrb[0].mxu0
      %841 = vmatprep.mubr.bf16.mxu0 0
      %842 = vmatmul.mubr.bf16.gmra.mrb[0].mxu0 %v761
      %v843 = vpop.f32.mrb[0].mxu0
      %v844 = vadd.f32 %v731, %v843
      %v845 = vpop.f32.mrb[0].mxu0
      %v846 = vpop.f32.mrb[0].mxu0
      %v847 = vadd.f32 %v731, %v846
      %v848 = vpop.f32.mrb[0].mxu0
      %849 = vmatprep.mubr.bf16.mxu0 0
      %850 = vmatmul.mubr.bf16.gmra.mrb[0].mxu0 %v764
      %v851 = vpop.f32.mrb[0].mxu0
      %v852 = vadd.f32 %v731, %v851
      %v853 = vpop.f32.mrb[0].mxu0
      %v854 = vpop.f32.mrb[0].mxu0
      %v855 = vadd.f32 %v731, %v854
      %v856 = vpop.f32.mrb[0].mxu0
      %857 = vmatprep.mubr.bf16.mxu0 0
      %858 = vmatmul.mubr.bf16.gmra.mrb[0].mxu0 %v767
      %v859 = vpop.f32.mrb[0].mxu0
      %v860 = vadd.f32 %v731, %v859
      %v861 = vpop.f32.mrb[0].mxu0
      %v862 = vpop.f32.mrb[0].mxu0
      %v863 = vadd.f32 %v731, %v862
      %v864 = vpop.f32.mrb[0].mxu0
      %865 = vdwg.mxu0
      %v866 = vmax.f32 %v804, 0.0
      %v867 = vmax.f32 %v807, 0.0
      %v868 = vmax.f32 %v812, 0.0
      %v869 = vmax.f32 %v815, 0.0
      %v870 = vmax.f32 %v820, 0.0
      %v871 = vmax.f32 %v823, 0.0
      %v872 = vmax.f32 %v828, 0.0
      %v873 = vmax.f32 %v831, 0.0
      %v874 = vmax.f32 %v836, 0.0
      %v875 = vmax.f32 %v839, 0.0
      %v876 = vmax.f32 %v844, 0.0
      %v877 = vmax.f32 %v847, 0.0
      %v878 = vmax.f32 %v852, 0.0
      %v879 = vmax.f32 %v855, 0.0
      %v880 = vmax.f32 %v860, 0.0
      %v881 = vmax.f32 %v863, 0.0
      %v882 = vpack.c.bf16 %v867, %v866
      %v883 = vpack.c.bf16 %v869, %v868
      %v884 = vpack.c.bf16 %v871, %v870
      %v885 = vpack.c.bf16 %v873, %v872
      %v886 = vpack.c.bf16 %v875, %v874
      %v887 = vpack.c.bf16 %v877, %v876
      %v888 = vpack.c.bf16 %v879, %v878
      %v889 = vpack.c.bf16 %v881, %v880
      %890 = vmatprep.subr.bf16.mxu0 0
      %891 = vmatpush1.bf16.msra.mxu0 %v882
      %892 = vmatprep.subr.bf16.mxu0 0
      %893 = vmatpush1.bf16.msra.mxu0 %v883
      %894 = vmatprep.subr.bf16.mxu0 0
      %895 = vmatpush1.bf16.msra.mxu0 %v884
      %896 = vmatprep.subr.bf16.mxu0 0
      %897 = vmatpush1.bf16.msra.mxu0 %v885
      %898 = vmatprep.subr.bf16.mxu0 0
      %899 = vmatpush1.bf16.msra.mxu0 %v886
      %900 = vmatprep.subr.bf16.mxu0 0
      %901 = vmatpush1.bf16.msra.mxu0 %v887
      %902 = vmatprep.subr.bf16.mxu0 0
      %903 = vmatpush1.bf16.msra.mxu0 %v888
      %904 = vmatprep.subr.bf16.mxu0 0
      %905 = vmatpush1.bf16.msra.mxu0 %v889
      %906 = vmatprep.subr.bf16.mxu0 0
      %907 = vmatpush1.bf16.msra.mxu0 0
      %908 = vmatprep.subr.bf16.mxu0 0
      %909 = vmatpush1.bf16.msra.mxu0 0
      %910 = vmatprep.subr.bf16.mxu0 0
      %911 = vmatpush1.bf16.msra.mxu0 0
      %912 = vmatprep.subr.bf16.mxu0 0
      %913 = vmatpush1.bf16.msra.mxu0 0
      %914 = vmatprep.subr.bf16.mxu0 0
      %915 = vmatpush1.bf16.msra.mxu0 0
      %916 = vmatprep.subr.bf16.mxu0 0
      %917 = vmatpush1.bf16.msra.mxu0 0
      %918 = vmatprep.subr.bf16.mxu0 0
      %919 = vmatpush1.bf16.msra.mxu0 0
      %920 = vmatprep.subr.bf16.mxu0 0
      %921 = vmatpush1.bf16.msra.mxu0 0
      %922 = vmatprep.mubr.bf16.mxu0 0
      %923 = vmatmul.mubr.bf16.gmra.mrb[0].mxu0 %v401
      %v924 = vpop.f32.mrb[0].mxu0
      %v925 = vadd.f32 0.0, %v924
      %v926 = vpop.f32.mrb[0].mxu0
      %v927 = vpop.f32.mrb[0].mxu0
      %v928 = vadd.f32 0.0, %v927
      %v929 = vpop.f32.mrb[0].mxu0
      %930 = vmatprep.mubr.bf16.mxu0 0
      %931 = vmatmul.mubr.bf16.gmra.mrb[0].mxu0 %v402
      %v932 = vpop.f32.mrb[0].mxu0
      %v933 = vadd.f32 0.0, %v932
      %v934 = vpop.f32.mrb[0].mxu0
      %v935 = vpop.f32.mrb[0].mxu0
      %v936 = vadd.f32 0.0, %v935
      %v937 = vpop.f32.mrb[0].mxu0
      %938 = vmatprep.mubr.bf16.mxu0 0
      %939 = vmatmul.mubr.bf16.gmra.mrb[0].mxu0 %v403
      %v940 = vpop.f32.mrb[0].mxu0
      %v941 = vadd.f32 0.0, %v940
      %v942 = vpop.f32.mrb[0].mxu0
      %v943 = vpop.f32.mrb[0].mxu0
      %v944 = vadd.f32 0.0, %v943
      %v945 = vpop.f32.mrb[0].mxu0
      %946 = vmatprep.mubr.bf16.mxu0 0
      %947 = vmatmul.mubr.bf16.gmra.mrb[0].mxu0 %v404
      %v948 = vpop.f32.mrb[0].mxu0
      %v949 = vadd.f32 0.0, %v948
      %v950 = vpop.f32.mrb[0].mxu0
      %v951 = vpop.f32.mrb[0].mxu0
      %v952 = vadd.f32 0.0, %v951
      %v953 = vpop.f32.mrb[0].mxu0
      %954 = vmatprep.mubr.bf16.mxu0 0
      %955 = vmatmul.mubr.bf16.gmra.mrb[0].mxu0 %v405
      %v956 = vpop.f32.mrb[0].mxu0
      %v957 = vadd.f32 0.0, %v956
      %v958 = vpop.f32.mrb[0].mxu0
      %v959 = vpop.f32.mrb[0].mxu0
      %v960 = vadd.f32 0.0, %v959
      %v961 = vpop.f32.mrb[0].mxu0
      %962 = vmatprep.mubr.bf16.mxu0 0
      %963 = vmatmul.mubr.bf16.gmra.mrb[0].mxu0 %v406
      %v964 = vpop.f32.mrb[0].mxu0
      %v965 = vadd.f32 0.0, %v964
      %v966 = vpop.f32.mrb[0].mxu0
      %v967 = vpop.f32.mrb[0].mxu0
      %v968 = vadd.f32 0.0, %v967
      %v969 = vpop.f32.mrb[0].mxu0
      %970 = vmatprep.mubr.bf16.mxu0 0
      %971 = vmatmul.mubr.bf16.gmra.mrb[0].mxu0 %v407
      %v972 = vpop.f32.mrb[0].mxu0
      %v973 = vadd.f32 0.0, %v972
      %v974 = vpop.f32.mrb[0].mxu0
      %v975 = vpop.f32.mrb[0].mxu0
      %v976 = vadd.f32 0.0, %v975
      %v977 = vpop.f32.mrb[0].mxu0
      %978 = vmatprep.mubr.bf16.mxu0 0
      %979 = vmatmul.mubr.bf16.gmra.mrb[0].mxu0 %v408
      %v980 = vpop.f32.mrb[0].mxu0
      %v981 = vadd.f32 0.0, %v980
      %v982 = vpop.f32.mrb[0].mxu0
      %v983 = vpop.f32.mrb[0].mxu0
      %v984 = vadd.f32 0.0, %v983
      %v985 = vpop.f32.mrb[0].mxu0
      %986 = vdwg.mxu0
      %v987 = vpack.c.bf16 %v928, %v925
      %v988 = vpack.c.bf16 %v936, %v933
      %v989 = vpack.c.bf16 %v944, %v941
      %v990 = vpack.c.bf16 %v952, %v949
      %v991 = vpack.c.bf16 %v960, %v957
      %v992 = vpack.c.bf16 %v968, %v965
      %v993 = vpack.c.bf16 %v976, %v973
      %v994 = vpack.c.bf16 %v984, %v981
      %v995 = vlaneseq
      %v996 = vshrl.u32 %v995, 7
      %v997 = vsub.s32 2, %v996
      %v998 = vrot.slane %v336, %v997
      %v1003 = vunpack.c.l.b16 %v341
      %v1004 = vunpack.c.l.b16 %v342
      %v1005 = vunpack.c.l.b16 %v343
      %v1006 = vunpack.c.l.b16 %v344
      %v1007 = vpack.c.b16 %v1004, %v1003
      %v1008 = vpack.c.b16 %v1006, %v1005
      %v1012 = vsel %vm744, %v987, 0
      %v1015 = vsel %vm744, %v988, 0
      %v1018 = vsel %vm744, %v989, 0
      %v1021 = vsel %vm744, %v990, 0
      %v1024 = vsel %vm744, %v991, 0
      %v1027 = vsel %vm744, %v992, 0
      %v1030 = vsel %vm744, %v993, 0
      %v1033 = vsel %vm744, %v994, 0
      %1035 = vmatprep.subr.bf16.mxu0 0
      %1036 = vmatpush1.bf16.msra.mxu0 %v1007
      %1037 = vmatprep.subr.bf16.mxu0 0
      %1038 = vmatpush1.bf16.msra.mxu0 %v1008
      %1039 = vmatprep.subr.bf16.mxu0 0
      %1040 = vmatpush1.bf16.msra.mxu0 0
      %1041 = vmatprep.subr.bf16.mxu0 0
      %1042 = vmatpush1.bf16.msra.mxu0 0
      %1043 = vmatprep.subr.bf16.mxu0 0
      %1044 = vmatpush1.bf16.msra.mxu0 0
      %1045 = vmatprep.subr.bf16.mxu0 0
      %1046 = vmatpush1.bf16.msra.mxu0 0
      %1047 = vmatprep.subr.bf16.mxu0 0
      %1048 = vmatpush1.bf16.msra.mxu0 0
      %1049 = vmatprep.subr.bf16.mxu0 0
      %1050 = vmatpush1.bf16.msra.mxu0 0
      %1051 = vmatprep.subr.bf16.mxu0 0
      %1052 = vmatpush1.bf16.msra.mxu0 0
      %1053 = vmatprep.subr.bf16.mxu0 0
      %1054 = vmatpush1.bf16.msra.mxu0 0
      %1055 = vmatprep.subr.bf16.mxu0 0
      %1056 = vmatpush1.bf16.msra.mxu0 0
      %1057 = vmatprep.subr.bf16.mxu0 0
      %1058 = vmatpush1.bf16.msra.mxu0 0
      %1059 = vmatprep.subr.bf16.mxu0 0
      %1060 = vmatpush1.bf16.msra.mxu0 0
      %1061 = vmatprep.subr.bf16.mxu0 0
      %1062 = vmatpush1.bf16.msra.mxu0 0
      %1063 = vmatprep.subr.bf16.mxu0 0
      %1064 = vmatpush1.bf16.msra.mxu0 0
      %1065 = vmatprep.subr.bf16.mxu0 0
      %1066 = vmatpush1.bf16.msra.mxu0 0
      %1067 = vmatprep.mubr.bf16.mxu0 0
      %1068 = vmatmul.mubr.bf16.gmra.mrb[0].mxu0 %v1012
      %v1069 = vpop.f32.mrb[0].mxu0
      %v1070 = vadd.f32 %v998, %v1069
      %v1071 = vpop.f32.mrb[0].mxu0
      %v1072 = vpop.f32.mrb[0].mxu0
      %v1073 = vadd.f32 %v998, %v1072
      %v1074 = vpop.f32.mrb[0].mxu0
      %1075 = vmatprep.mubr.bf16.mxu0 0
      %1076 = vmatmul.mubr.bf16.gmra.mrb[0].mxu0 %v1015
      %v1077 = vpop.f32.mrb[0].mxu0
      %v1078 = vadd.f32 %v998, %v1077
      %v1079 = vpop.f32.mrb[0].mxu0
      %v1080 = vpop.f32.mrb[0].mxu0
      %v1081 = vadd.f32 %v998, %v1080
      %v1082 = vpop.f32.mrb[0].mxu0
      %1083 = vmatprep.mubr.bf16.mxu0 0
      %1084 = vmatmul.mubr.bf16.gmra.mrb[0].mxu0 %v1018
      %v1085 = vpop.f32.mrb[0].mxu0
      %v1086 = vadd.f32 %v998, %v1085
      %v1087 = vpop.f32.mrb[0].mxu0
      %v1088 = vpop.f32.mrb[0].mxu0
      %v1089 = vadd.f32 %v998, %v1088
      %v1090 = vpop.f32.mrb[0].mxu0
      %1091 = vmatprep.mubr.bf16.mxu0 0
      %1092 = vmatmul.mubr.bf16.gmra.mrb[0].mxu0 %v1021
      %v1093 = vpop.f32.mrb[0].mxu0
      %v1094 = vadd.f32 %v998, %v1093
      %v1095 = vpop.f32.mrb[0].mxu0
      %v1096 = vpop.f32.mrb[0].mxu0
      %v1097 = vadd.f32 %v998, %v1096
      %v1098 = vpop.f32.mrb[0].mxu0
      %1099 = vmatprep.mubr.bf16.mxu0 0
      %1100 = vmatmul.mubr.bf16.gmra.mrb[0].mxu0 %v1024
      %v1101 = vpop.f32.mrb[0].mxu0
      %v1102 = vadd.f32 %v998, %v1101
      %v1103 = vpop.f32.mrb[0].mxu0
      %v1104 = vpop.f32.mrb[0].mxu0
      %v1105 = vadd.f32 %v998, %v1104
      %v1106 = vpop.f32.mrb[0].mxu0
      %1107 = vmatprep.mubr.bf16.mxu0 0
      %1108 = vmatmul.mubr.bf16.gmra.mrb[0].mxu0 %v1027
      %v1109 = vpop.f32.mrb[0].mxu0
      %v1110 = vadd.f32 %v998, %v1109
      %v1111 = vpop.f32.mrb[0].mxu0
      %v1112 = vpop.f32.mrb[0].mxu0
      %v1113 = vadd.f32 %v998, %v1112
      %v1114 = vpop.f32.mrb[0].mxu0
      %1115 = vmatprep.mubr.bf16.mxu0 0
      %1116 = vmatmul.mubr.bf16.gmra.mrb[0].mxu0 %v1030
      %v1117 = vpop.f32.mrb[0].mxu0
      %v1118 = vadd.f32 %v998, %v1117
      %v1119 = vpop.f32.mrb[0].mxu0
      %v1120 = vpop.f32.mrb[0].mxu0
      %v1121 = vadd.f32 %v998, %v1120
      %v1122 = vpop.f32.mrb[0].mxu0
      %1123 = vmatprep.mubr.bf16.mxu0 0
      %1124 = vmatmul.mubr.bf16.gmra.mrb[0].mxu0 %v1033
      %v1125 = vpop.f32.mrb[0].mxu0
      %v1126 = vadd.f32 %v998, %v1125
      %v1127 = vpop.f32.mrb[0].mxu0
      %v1128 = vpop.f32.mrb[0].mxu0
      %v1129 = vadd.f32 %v998, %v1128
      %v1130 = vpop.f32.mrb[0].mxu0
      %1131 = vdwg.mxu0
      %v1132 = vmax.f32 %v1070, 0.0
      %v1133 = vmax.f32 %v1073, 0.0
      %v1134 = vmax.f32 %v1078, 0.0
      %v1135 = vmax.f32 %v1081, 0.0
      %v1136 = vmax.f32 %v1086, 0.0
      %v1137 = vmax.f32 %v1089, 0.0
      %v1138 = vmax.f32 %v1094, 0.0
      %v1139 = vmax.f32 %v1097, 0.0
      %v1140 = vmax.f32 %v1102, 0.0
      %v1141 = vmax.f32 %v1105, 0.0
      %v1142 = vmax.f32 %v1110, 0.0
      %v1143 = vmax.f32 %v1113, 0.0
      %v1144 = vmax.f32 %v1118, 0.0
      %v1145 = vmax.f32 %v1121, 0.0
      %v1146 = vmax.f32 %v1126, 0.0
      %v1147 = vmax.f32 %v1129, 0.0
      %v1148 = vpack.c.bf16 %v1133, %v1132
      %v1149 = vpack.c.bf16 %v1135, %v1134
      %v1150 = vpack.c.bf16 %v1137, %v1136
      %v1151 = vpack.c.bf16 %v1139, %v1138
      %v1152 = vpack.c.bf16 %v1141, %v1140
      %v1153 = vpack.c.bf16 %v1143, %v1142
      %v1154 = vpack.c.bf16 %v1145, %v1144
      %v1155 = vpack.c.bf16 %v1147, %v1146
      %v1156 = vlaneseq
      %v1157 = vshrl.u32 %v1156, 7
      %v1158 = vsub.s32 3, %v1157
      %v1159 = vrot.slane %v336, %v1158
      %v1164 = vunpack.c.l.b16 %v345
      %v1165 = vunpack.c.l.b16 %v346
      %v1166 = vunpack.c.l.b16 %v347
      %v1167 = vunpack.c.l.b16 %v348
      %v1168 = vpack.c.b16 %v1165, %v1164
      %v1169 = vpack.c.b16 %v1167, %v1166
      %v1173 = vsel %vm744, %v1148, 0
      %v1176 = vsel %vm744, %v1149, 0
      %v1179 = vsel %vm744, %v1150, 0
      %v1182 = vsel %vm744, %v1151, 0
      %v1185 = vsel %vm744, %v1152, 0
      %v1188 = vsel %vm744, %v1153, 0
      %v1191 = vsel %vm744, %v1154, 0
      %v1194 = vsel %vm744, %v1155, 0
      %1196 = vmatprep.subr.bf16.mxu0 0
      %1197 = vmatpush1.bf16.msra.mxu0 %v1168
      %1198 = vmatprep.subr.bf16.mxu0 0
      %1199 = vmatpush1.bf16.msra.mxu0 %v1169
      %1200 = vmatprep.subr.bf16.mxu0 0
      %1201 = vmatpush1.bf16.msra.mxu0 0
      %1202 = vmatprep.subr.bf16.mxu0 0
      %1203 = vmatpush1.bf16.msra.mxu0 0
      %1204 = vmatprep.subr.bf16.mxu0 0
      %1205 = vmatpush1.bf16.msra.mxu0 0
      %1206 = vmatprep.subr.bf16.mxu0 0
      %1207 = vmatpush1.bf16.msra.mxu0 0
      %1208 = vmatprep.subr.bf16.mxu0 0
      %1209 = vmatpush1.bf16.msra.mxu0 0
      %1210 = vmatprep.subr.bf16.mxu0 0
      %1211 = vmatpush1.bf16.msra.mxu0 0
      %1212 = vmatprep.subr.bf16.mxu0 0
      %1213 = vmatpush1.bf16.msra.mxu0 0
      %1214 = vmatprep.subr.bf16.mxu0 0
      %1215 = vmatpush1.bf16.msra.mxu0 0
      %1216 = vmatprep.subr.bf16.mxu0 0
      %1217 = vmatpush1.bf16.msra.mxu0 0
      %1218 = vmatprep.subr.bf16.mxu0 0
      %1219 = vmatpush1.bf16.msra.mxu0 0
      %1220 = vmatprep.subr.bf16.mxu0 0
      %1221 = vmatpush1.bf16.msra.mxu0 0
      %1222 = vmatprep.subr.bf16.mxu0 0
      %1223 = vmatpush1.bf16.msra.mxu0 0
      %1224 = vmatprep.subr.bf16.mxu0 0
      %1225 = vmatpush1.bf16.msra.mxu0 0
      %1226 = vmatprep.subr.bf16.mxu0 0
      %1227 = vmatpush1.bf16.msra.mxu0 0
      %1228 = vmatprep.mubr.bf16.mxu0 0
      %1229 = vmatmul.mubr.bf16.gmra.mrb[0].mxu0 %v1173
      %v1230 = vpop.f32.mrb[0].mxu0
      %v1231 = vadd.f32 %v1159, %v1230
      %v1232 = vpop.f32.mrb[0].mxu0
      %v1233 = vpop.f32.mrb[0].mxu0
      %v1234 = vadd.f32 %v1159, %v1233
      %v1235 = vpop.f32.mrb[0].mxu0
      %1236 = vmatprep.mubr.bf16.mxu0 0
      %1237 = vmatmul.mubr.bf16.gmra.mrb[0].mxu0 %v1176
      %v1238 = vpop.f32.mrb[0].mxu0
      %v1239 = vadd.f32 %v1159, %v1238
      %v1240 = vpop.f32.mrb[0].mxu0
      %v1241 = vpop.f32.mrb[0].mxu0
      %v1242 = vadd.f32 %v1159, %v1241
      %v1243 = vpop.f32.mrb[0].mxu0
      %1244 = vmatprep.mubr.bf16.mxu0 0
      %1245 = vmatmul.mubr.bf16.gmra.mrb[0].mxu0 %v1179
      %v1246 = vpop.f32.mrb[0].mxu0
      %v1247 = vadd.f32 %v1159, %v1246
      %v1248 = vpop.f32.mrb[0].mxu0
      %v1249 = vpop.f32.mrb[0].mxu0
      %v1250 = vadd.f32 %v1159, %v1249
      %v1251 = vpop.f32.mrb[0].mxu0
      %1252 = vmatprep.mubr.bf16.mxu0 0
      %1253 = vmatmul.mubr.bf16.gmra.mrb[0].mxu0 %v1182
      %v1254 = vpop.f32.mrb[0].mxu0
      %v1255 = vadd.f32 %v1159, %v1254
      %v1256 = vpop.f32.mrb[0].mxu0
      %v1257 = vpop.f32.mrb[0].mxu0
      %v1258 = vadd.f32 %v1159, %v1257
      %v1259 = vpop.f32.mrb[0].mxu0
      %1260 = vmatprep.mubr.bf16.mxu0 0
      %1261 = vmatmul.mubr.bf16.gmra.mrb[0].mxu0 %v1185
      %v1262 = vpop.f32.mrb[0].mxu0
      %v1263 = vadd.f32 %v1159, %v1262
      %v1264 = vpop.f32.mrb[0].mxu0
      %v1265 = vpop.f32.mrb[0].mxu0
      %v1266 = vadd.f32 %v1159, %v1265
      %v1267 = vpop.f32.mrb[0].mxu0
      %1268 = vmatprep.mubr.bf16.mxu0 0
      %1269 = vmatmul.mubr.bf16.gmra.mrb[0].mxu0 %v1188
      %v1270 = vpop.f32.mrb[0].mxu0
      %v1271 = vadd.f32 %v1159, %v1270
      %v1272 = vpop.f32.mrb[0].mxu0
      %v1273 = vpop.f32.mrb[0].mxu0
      %v1274 = vadd.f32 %v1159, %v1273
      %v1275 = vpop.f32.mrb[0].mxu0
      %1276 = vmatprep.mubr.bf16.mxu0 0
      %1277 = vmatmul.mubr.bf16.gmra.mrb[0].mxu0 %v1191
      %v1278 = vpop.f32.mrb[0].mxu0
      %v1279 = vadd.f32 %v1159, %v1278
      %v1280 = vpop.f32.mrb[0].mxu0
      %v1281 = vpop.f32.mrb[0].mxu0
      %v1282 = vadd.f32 %v1159, %v1281
      %v1283 = vpop.f32.mrb[0].mxu0
      %1284 = vmatprep.mubr.bf16.mxu0 0
      %1285 = vmatmul.mubr.bf16.gmra.mrb[0].mxu0 %v1194
      %v1286 = vpop.f32.mrb[0].mxu0
      %v1287 = vadd.f32 %v1159, %v1286
      %v1288 = vpop.f32.mrb[0].mxu0
      %v1289 = vpop.f32.mrb[0].mxu0
      %v1290 = vadd.f32 %v1159, %v1289
      %v1291 = vpop.f32.mrb[0].mxu0
      %1292 = vdwg.mxu0
      %v1293 = vmax.f32 %v1231, 0.0
      %v1294 = vmax.f32 %v1234, 0.0
      %v1295 = vmax.f32 %v1239, 0.0
      %v1296 = vmax.f32 %v1242, 0.0
      %v1297 = vmax.f32 %v1247, 0.0
      %v1298 = vmax.f32 %v1250, 0.0
      %v1299 = vmax.f32 %v1255, 0.0
      %v1300 = vmax.f32 %v1258, 0.0
      %v1301 = vmax.f32 %v1263, 0.0
      %v1302 = vmax.f32 %v1266, 0.0
      %v1303 = vmax.f32 %v1271, 0.0
      %v1304 = vmax.f32 %v1274, 0.0
      %v1305 = vmax.f32 %v1279, 0.0
      %v1306 = vmax.f32 %v1282, 0.0
      %v1307 = vmax.f32 %v1287, 0.0
      %v1308 = vmax.f32 %v1290, 0.0
      %v1309 = vld [vmem:[%s313] sm:$0xf]
      %v1310 = vld [vmem:[%s313 + $0x4] sm:$0xf]
      %v1311 = vpack.c.bf16 %v1294, %v1293
      %v1312 = vpack.c.bf16 %v1296, %v1295
      %v1313 = vpack.c.bf16 %v1298, %v1297
      %v1314 = vpack.c.bf16 %v1300, %v1299
      %v1315 = vpack.c.bf16 %v1302, %v1301
      %v1316 = vpack.c.bf16 %v1304, %v1303
      %v1317 = vpack.c.bf16 %v1306, %v1305
      %v1318 = vpack.c.bf16 %v1308, %v1307
      %v1321 = vunpack.c.l.b16 %v1309
      %v1322 = vunpack.c.l.b16 %v1310
      %v1323 = vpack.c.b16 %v1322, %v1321
      %1325 = vmatprep.subr.bf16.mxu0 0
      %1326 = vmatpush1.bf16.msra.mxu0 %v1311
      %1327 = vmatprep.subr.bf16.mxu0 0
      %1328 = vmatpush1.bf16.msra.mxu0 %v1312
      %1329 = vmatprep.subr.bf16.mxu0 0
      %1330 = vmatpush1.bf16.msra.mxu0 %v1313
      %1331 = vmatprep.subr.bf16.mxu0 0
      %1332 = vmatpush1.bf16.msra.mxu0 %v1314
      %1333 = vmatprep.subr.bf16.mxu0 0
      %1334 = vmatpush1.bf16.msra.mxu0 %v1315
      %1335 = vmatprep.subr.bf16.mxu0 0
      %1336 = vmatpush1.bf16.msra.mxu0 %v1316
      %1337 = vmatprep.subr.bf16.mxu0 0
      %1338 = vmatpush1.bf16.msra.mxu0 %v1317
      %1339 = vmatprep.subr.bf16.mxu0 0
      %1340 = vmatpush1.bf16.msra.mxu0 %v1318
      %1341 = vmatprep.subr.bf16.mxu0 0
      %1342 = vmatpush1.bf16.msra.mxu0 0
      %1343 = vmatprep.subr.bf16.mxu0 0
      %1344 = vmatpush1.bf16.msra.mxu0 0
      %1345 = vmatprep.subr.bf16.mxu0 0
      %1346 = vmatpush1.bf16.msra.mxu0 0
      %1347 = vmatprep.subr.bf16.mxu0 0
      %1348 = vmatpush1.bf16.msra.mxu0 0
      %1349 = vmatprep.subr.bf16.mxu0 0
      %1350 = vmatpush1.bf16.msra.mxu0 0
      %1351 = vmatprep.subr.bf16.mxu0 0
      %1352 = vmatpush1.bf16.msra.mxu0 0
      %1353 = vmatprep.subr.bf16.mxu0 0
      %1354 = vmatpush1.bf16.msra.mxu0 0
      %1355 = vmatprep.subr.bf16.mxu0 0
      %1356 = vmatpush1.bf16.msra.mxu0 0
      %1357 = vmatprep.mubr.bf16.mxu0 0
      %1358 = vmatmul.mubr.bf16.gmra.mrb[0].mxu0 %v1323
      %v1359 = vpop.f32.mrb[0].mxu0
      %v1360 = vadd.f32 0.0, %v1359
      %v1361 = vpop.f32.mrb[0].mxu0
      %v1362 = vpop.f32.mrb[0].mxu0
      %v1363 = vadd.f32 0.0, %v1362
      %v1364 = vpop.f32.mrb[0].mxu0
      %1365 = vdwg.mxu0
      %v1366 = vpack.c.bf16 %v1363, %v1360
      %v1367 = vlaneseq
      %v1368 = vshrl.u32 %v1367, 7
      %v1369 = vsub.s32 4, %v1368
      %v1370 = vrot.slane %v336, %v1369
      %v1375 = vunpack.c.l.b16 %v349
      %v1376 = vunpack.c.l.b16 %v350
      %v1377 = vunpack.c.l.b16 %v351
      %v1378 = vunpack.c.l.b16 %v352
      %v1379 = vpack.c.b16 %v1376, %v1375
      %v1380 = vpack.c.b16 %v1378, %v1377
      %v1384 = vsel %vm744, %v1366, 0
      %1386 = vmatprep.subr.bf16.mxu0 0
      %1387 = vmatpush1.bf16.msra.mxu0 %v1379
      %1388 = vmatprep.subr.bf16.mxu0 0
      %1389 = vmatpush1.bf16.msra.mxu0 %v1380
      %1390 = vmatprep.subr.bf16.mxu0 0
      %1391 = vmatpush1.bf16.msra.mxu0 0
      %1392 = vmatprep.subr.bf16.mxu0 0
      %1393 = vmatpush1.bf16.msra.mxu0 0
      %1394 = vmatprep.subr.bf16.mxu0 0
      %1395 = vmatpush1.bf16.msra.mxu0 0
      %1396 = vmatprep.subr.bf16.mxu0 0
      %1397 = vmatpush1.bf16.msra.mxu0 0
      %1398 = vmatprep.subr.bf16.mxu0 0
      %1399 = vmatpush1.bf16.msra.mxu0 0
      %1400 = vmatprep.subr.bf16.mxu0 0
      %1401 = vmatpush1.bf16.msra.mxu0 0
      %1402 = vmatprep.subr.bf16.mxu0 0
      %1403 = vmatpush1.bf16.msra.mxu0 0
      %1404 = vmatprep.subr.bf16.mxu0 0
      %1405 = vmatpush1.bf16.msra.mxu0 0
      %1406 = vmatprep.subr.bf16.mxu0 0
      %1407 = vmatpush1.bf16.msra.mxu0 0
      %1408 = vmatprep.subr.bf16.mxu0 0
      %1409 = vmatpush1.bf16.msra.mxu0 0
      %1410 = vmatprep.subr.bf16.mxu0 0
      %1411 = vmatpush1.bf16.msra.mxu0 0
      %1412 = vmatprep.subr.bf16.mxu0 0
      %1413 = vmatpush1.bf16.msra.mxu0 0
      %1414 = vmatprep.subr.bf16.mxu0 0
      %1415 = vmatpush1.bf16.msra.mxu0 0
      %1416 = vmatprep.subr.bf16.mxu0 0
      %1417 = vmatpush1.bf16.msra.mxu0 0
      %1418 = vmatprep.mubr.bf16.mxu0 0
      %1419 = vmatmul.mubr.bf16.gmra.mrb[0].mxu0 %v1384
      %v1420 = vpop.f32.mrb[0].mxu0
      %v1421 = vadd.f32 %v1370, %v1420
      %v1422 = vpop.f32.mrb[0].mxu0
      %v1423 = vpop.f32.mrb[0].mxu0
      %v1424 = vadd.f32 %v1370, %v1423
      %v1425 = vpop.f32.mrb[0].mxu0
      %1426 = vdwg.mxu0
      %v1427 = vmax.f32 %v1421, 0.0
      %v1428 = vmax.f32 %v1424, 0.0
      %v1429 = vpack.c.bf16 %v1428, %v1427
      %v1430 = vld [vmem:[%s5] sm:$0xf]
      %v1431 = vld [vmem:[%s5 + $0x4] sm:$0xf]
      %v1432 = vld [vmem:[%s5 + $0x8] sm:$0xf]
      %v1433 = vld [vmem:[%s5 + $0xc] sm:$0xf]
      %v1434 = vlaneseq
      %v1435 = vshrl.u32 %v1434, 7
      %v1436 = vsub.s32 5, %v1435
      %v1437 = vrot.slane %v336, %v1436
      %v1442 = vunpack.c.l.b16 %v1430
      %v1443 = vunpack.c.l.b16 %v1431
      %v1444 = vunpack.c.l.b16 %v1432
      %v1445 = vunpack.c.l.b16 %v1433
      %v1446 = vpack.c.b16 %v1443, %v1442
      %v1447 = vpack.c.b16 %v1445, %v1444
      %v1451 = vsel %vm744, %v1429, 0
      %1453 = vmatprep.subr.bf16.mxu0 0
      %1454 = vmatpush1.bf16.msra.mxu0 %v1446
      %1455 = vmatprep.subr.bf16.mxu0 0
      %1456 = vmatpush1.bf16.msra.mxu0 %v1447
      %1457 = vmatprep.subr.bf16.mxu0 0
      %1458 = vmatpush1.bf16.msra.mxu0 0
      %1459 = vmatprep.subr.bf16.mxu0 0
      %1460 = vmatpush1.bf16.msra.mxu0 0
      %1461 = vmatprep.subr.bf16.mxu0 0
      %1462 = vmatpush1.bf16.msra.mxu0 0
      %1463 = vmatprep.subr.bf16.mxu0 0
      %1464 = vmatpush1.bf16.msra.mxu0 0
      %1465 = vmatprep.subr.bf16.mxu0 0
      %1466 = vmatpush1.bf16.msra.mxu0 0
      %1467 = vmatprep.subr.bf16.mxu0 0
      %1468 = vmatpush1.bf16.msra.mxu0 0
      %1469 = vmatprep.subr.bf16.mxu0 0
      %1470 = vmatpush1.bf16.msra.mxu0 0
      %1471 = vmatprep.subr.bf16.mxu0 0
      %1472 = vmatpush1.bf16.msra.mxu0 0
      %1473 = vmatprep.subr.bf16.mxu0 0
      %1474 = vmatpush1.bf16.msra.mxu0 0
      %1475 = vmatprep.subr.bf16.mxu0 0
      %1476 = vmatpush1.bf16.msra.mxu0 0
      %1477 = vmatprep.subr.bf16.mxu0 0
      %1478 = vmatpush1.bf16.msra.mxu0 0
      %1479 = vmatprep.subr.bf16.mxu0 0
      %1480 = vmatpush1.bf16.msra.mxu0 0
      %1481 = vmatprep.subr.bf16.mxu0 0
      %1482 = vmatpush1.bf16.msra.mxu0 0
      %1483 = vmatprep.subr.bf16.mxu0 0
      %1484 = vmatpush1.bf16.msra.mxu0 0
      %1485 = vmatprep.mubr.bf16.mxu0 0
      %1486 = vmatmul.mubr.bf16.gmra.mrb[0].mxu0 %v1451
      %v1487 = vpop.f32.mrb[0].mxu0
      %v1488 = vadd.f32 %v1437, %v1487
      %v1489 = vpop.f32.mrb[0].mxu0
      %v1490 = vpop.f32.mrb[0].mxu0
      %v1491 = vadd.f32 %v1437, %v1490
      %v1492 = vpop.f32.mrb[0].mxu0
      %1493 = vdwg.mxu0
      %1494 = vst [vmem:[%s318] sm:$0xff] %v1488
      %1495 = vst [vmem:[%s318 + $0x8] sm:$0xff] %v1491
      %p1496 = scmp.lt.s32.totalorder %s18, 7
      %s1497 = scalar_select %p1496, %s18, 7
      %s1498 = smul.addr %s1497, 2
      %s1499 = smul.addr %s1498, 8
      %s1500 = scalar_lea.vmem %s7, %s1499
      // Predicated region
      $region49: #{gin_2l_forward.1} parent=47 // pred_check
        %p1501 = pneg %p198
      $region50: #{gin_2l_forward.1} parent=47 // pred_check_branch
        %1503 = sbr.rel (%p1501) target = $region52
      $region51: #{gin_2l_forward.1} parent=47 // pred_region
        _
      $region52: #{gin_2l_forward.1} parent=47 // pred_fallthru
        _
    $region48: #{gin_2l_forward.1} parent=5 // pred_fallthru
      _
    %p1504 = scmp.le.s32.totalorder 2, %s13
    // Predicated region
    $region53: #{gin_2l_forward.1} parent=5 // pred_check
      %p1505 = pneg %p1504
    $region54: #{gin_2l_forward.1} parent=5 // pred_check_branch
      %1507 = sbr.rel (%p1505) target = $region56
    $region55: #{gin_2l_forward.1} parent=5 // pred_region
      %s1508 = ssub.s32 %s13, 2
      // Predicated region
      $region57: #{gin_2l_forward.1} parent=55 // pred_check
        %p1509 = pneg %p204
      $region58: #{gin_2l_forward.1} parent=55 // pred_check_branch
        %1511 = sbr.rel (%p1509) target = $region60
      $region59: #{gin_2l_forward.1} parent=55 // pred_region
        %p1512 = scmp.lt.s32.totalorder %s19, 7
        %s1513 = scalar_select %p1512, %s19, 7
        %s1514 = smul.addr %s1513, 2
        %s1515 = smul.addr %s1514, 8
        %s1516 = scalar_lea.vmem %s7, %s1515
      $region60: #{gin_2l_forward.1} parent=55 // pred_fallthru
        _
    $region56: #{gin_2l_forward.1} parent=5 // pred_fallthru
      _
  $region6: #{gin_2l_forward.1} parent=0 // loop_footer
    %s17 = sadd.s32 1, %s13
  $region7: #{gin_2l_forward.1} parent=0 // loop_footer_branch
    %12 = sbr.rel target = $region3
  $region8: #{gin_2l_forward.1} parent=0 // loop_exit
    _

</llo_original>
